<compile_context>
chip_gen: v7x
topology: tpu7x:2x2x1
jax: 0.10.0
libtpu: 0.0.40
codegen_flags: <defaults>
</compile_context>

<pallas_src>
import functools
import math

import jax
import jax.numpy as jnp
from jax.experimental import pallas as pl
from jax.experimental.pallas import tpu as pltpu


# ---------------------------------------------------------------------------
# In-kernel helpers
# ---------------------------------------------------------------------------
def _layernorm(x, w, b, eps):
    """float32 LayerNorm over the last axis; w/b broadcast from (1, D)."""
    mu = jnp.mean(x, axis=-1, keepdims=True)
    xc = x - mu
    var = jnp.mean(xc * xc, axis=-1, keepdims=True)
    return xc * jax.lax.rsqrt(var + eps) * w + b


# ---------------------------------------------------------------------------
# Fused kernel: grid = (batch_tiles, num_blocks); one transformer block per
# inner step, activation carried in VMEM scratch, final LN + scoring at the
# last block step.
# ---------------------------------------------------------------------------
def sasrec_fused_kernel(x_ref, padm_ref, pos_ref, neg_ref,
                        ln1w_ref, ln1b_ref, wq_ref, bq_ref,
                        wkv_ref, bkv_ref, wo_ref, bo_ref,
                        ln2w_ref, ln2b_ref, w1_ref, b1_ref, w2_ref, b2_ref,
                        lnfw_ref, lnfb_ref,
                        pos_o_ref, neg_o_ref,
                        h_ref,
                        *, num_heads):
    blk = pl.program_id(1)
    TB, L, D = x_ref.shape
    hd = D // num_heads
    scale = 1.0 / math.sqrt(hd)
    cdt = jnp.bfloat16                       # MXU compute dtype (f32 accumulate)

    # First block of this batch tile: seed the carried activation scratch.
    @pl.when(blk == 0)
    def _():
        h_ref[...] = x_ref[...]

    x = h_ref[...]                           # (TB, L, D) f32
    xf = x.reshape(TB * L, D)
    padm_flat = padm_ref[...].reshape(TB * L, 1)

    # Causal additive bias built in-kernel (saves an (L, L) HBM input/DMA).
    row = jax.lax.broadcasted_iota(jnp.int32, (L, L), 0)
    col = jax.lax.broadcasted_iota(jnp.int32, (L, L), 1)
    causal_bias = jnp.where(col <= row, jnp.float32(0.0), jnp.float32(-1e30))

    # --- attention sublayer: query = LN1(x); key = value = x (torch quirk) ---
    q_in = _layernorm(xf, ln1w_ref[0], ln1b_ref[0], 1e-7)                 # f32
    # 1/sqrt(hd) folded into Q once (instead of scaling every (L, L) score tile)
    q = (jnp.dot(q_in.astype(cdt), wq_ref[0],
                 preferred_element_type=jnp.float32) + bq_ref[0]) * scale
    q = q.astype(cdt).reshape(TB, L, D)
    # Fused K|V projection: one (TB*L, D) @ (D, 2D) matmul, split at lane D.
    kv = jnp.dot(xf.astype(cdt), wkv_ref[0],
                 preferred_element_type=jnp.float32) + bkv_ref[0]
    k = kv[:, :D].astype(cdt).reshape(TB, L, D)
    v = kv[:, D:].astype(cdt).reshape(TB, L, D)

    heads = []
    for h in range(num_heads):               # static: per-head lane slices
        sl = slice(h * hd, (h + 1) * hd)
        s = jnp.einsum("bld,bmd->blm", q[:, :, sl], k[:, :, sl],
                       preferred_element_type=jnp.float32)
        s = s + causal_bias
        s = s - jnp.max(s, axis=-1, keepdims=True)
        p = jnp.exp(s)
        denom = jnp.sum(p, axis=-1, keepdims=True)
        o = jnp.einsum("blm,bmd->bld", p.astype(cdt), v[:, :, sl],
                       preferred_element_type=jnp.float32)
        # Deferred softmax normalization: rescale the (L, hd) output via EUP
        # reciprocal instead of dividing the (L, L) probabilities on the VPU.
        heads.append(o * pl.reciprocal(denom, approx=True))
    attn = heads[0] if num_heads == 1 else jnp.concatenate(heads, axis=-1)

    attn = jnp.dot(attn.reshape(TB * L, D).astype(cdt), wo_ref[0],
                   preferred_element_type=jnp.float32) + bo_ref[0]
    y = q_in + attn                          # residual onto LN1(x), as in torch

    # --- point-wise FFN (Conv1d k=1 == per-position linear) ---
    y_ln = _layernorm(y, ln2w_ref[0], ln2b_ref[0], 1e-7)
    h1 = jnp.maximum(
        jnp.dot(y_ln.astype(cdt), w1_ref[0],
                preferred_element_type=jnp.float32) + b1_ref[0], 0.0)
    h2 = jnp.dot(h1.astype(cdt), w2_ref[0],
                 preferred_element_type=jnp.float32) + b2_ref[0]
    x_new = (h2 + y_ln) * padm_flat          # residual onto LN2 out + pad mask
    h_ref[...] = x_new.reshape(TB, L, D)

    # --- last block: final LayerNorm (eps=1e-8) + lane-dense pos/neg scoring ---
    @pl.when(blk == pl.num_programs(1) - 1)
    def _():
        feats = _layernorm(x_new, lnfw_ref[...], lnfb_ref[...], 1e-8)
        feats = feats.reshape(TB, L, D)
        pos_o_ref[...] = jnp.sum(feats * pos_ref[...].astype(jnp.float32), axis=-1)
        neg_o_ref[...] = jnp.sum(feats * neg_ref[...].astype(jnp.float32), axis=-1)


# ---------------------------------------------------------------------------
# Tiling / compiler-parameter helpers (generation-aware via get_tpu_info)
# ---------------------------------------------------------------------------
def _vmem_capacity_bytes():
    cap = 64 * 1024 * 1024                       # conservative (v7x per-TC)
    try:
        cap = int(getattr(pltpu.get_tpu_info(), "vmem_capacity_bytes", cap))
    except Exception:
        pass
    return cap


def _working_set_bytes(TB, L, D):
    act = TB * L * D * 4
    # double-buffered tile I/O: seqs(f32) + padmask + pos/neg(bf16) + 2 outputs
    io = 2 * (act + TB * L * 4 + 2 * (TB * L * D * 2) + 2 * (TB * L * 4))
    # one block's streamed weights, double-buffered (6 DxD bf16 + vecs) + final LN
    wts = 2 * (6 * D * D * 2 + 14 * D * 4) + 2 * (2 * D * 4)
    # carried activation scratch + live intermediates (q/k/v, scores, FFN, LNs)
    live = act + 10 * act + 2 * TB * L * L * 4
    return io + wts + live


def _pick_batch_tile(B, L, D, vmem_cap):
    """Batch tile TB: fill the MXU M dim / amortize per-step overhead on big-VMEM
    chips (v5e/v6e), stay under budget and prefer even step counts (2 TCs) on v7x.
    TB is kept == B or a multiple of 8 so the (TB, L) output blocks tile cleanly."""
    budget = int(0.6 * vmem_cap)
    target_rows = 512 if vmem_cap > (96 << 20) else 256
    divs = [d for d in range(1, B + 1) if B % d == 0]
    legal = [d for d in divs if d == B or d % 8 == 0]
    fit = [d for d in legal if _working_set_bytes(d, L, D) <= budget]
    if not fit:
        return min(legal)

    def even_steps(d):
        s = B // d
        return s == 1 or s % 2 == 0

    meets = [d for d in fit if d * L >= target_rows]
    if meets:
        pool = [d for d in meets if even_steps(d)] or meets
        return min(pool)                       # smallest tile meeting the target
    pool = [d for d in fit if even_steps(d)] or fit
    return max(pool)                           # otherwise fattest tile that fits


def _compiler_params(TB, L, D, vmem_cap):
    est = _working_set_bytes(TB, L, D)
    kwargs = dict(dimension_semantics=("parallel", "arbitrary"))
    # Leave Mosaic scratch headroom under physical VMEM (≈54 MiB on v7x,
    # ≈108 MiB on 128 MiB chips); only raise the scoped limit when needed.
    cap_limit = min(vmem_cap - (8 << 20), int(0.85 * vmem_cap))
    limit = min(int(1.25 * est), cap_limit)
    if limit > (16 << 20):
        kwargs["vmem_limit_bytes"] = int(limit)
    return pltpu.CompilerParams(**kwargs)


# ---------------------------------------------------------------------------
# Full SASRec forward (embedding gathers in XLA, everything else in Pallas)
# ---------------------------------------------------------------------------
def sasrec_forward(params, user_ids, log_seqs, pos_seqs, neg_seqs):
    del user_ids                                 # unused in reference forward
    item_emb = params["item_emb"]
    D = item_emb.shape[1]
    B, L = log_seqs.shape
    NB = int(params["num_blocks"])
    NH = int(params["num_heads"])

    # log2feats prologue: embed, scale by sqrt(D), add positional emb, pad-mask.
    # NOTE: for real models, pad D to a multiple of 128 (lane width) here.
    seqs = item_emb[log_seqs] * jnp.float32(math.sqrt(D))
    seqs = seqs + params["pos_emb"][None, :L, :]
    padm = (log_seqs != 0).astype(jnp.float32)[..., None]          # (B, L, 1)
    seqs = seqs * padm
    pos_e = item_emb[pos_seqs].astype(jnp.bfloat16)  # consumed only in final dot
    neg_e = item_emb[neg_seqs].astype(jnp.bfloat16)

    vmem_cap = _vmem_capacity_bytes()
    TB = _pick_batch_tile(B, L, D, vmem_cap)
    grid = (B // TB, NB)

    def batch_spec(tail):                        # per-batch-tile activations
        n = len(tail)
        return pl.BlockSpec((TB,) + tail, lambda b, i, _n=n: (b,) + (0,) * _n)

    def block_weight_spec(arr):                  # stream one block's weights/step
        tail = arr.shape[1:]
        n = len(tail)
        return pl.BlockSpec((1,) + tail, lambda b, i, _n=n: (i,) + (0,) * _n)

    def const_spec(arr):                         # grid-invariant (final LN)
        n = arr.ndim
        return pl.BlockSpec(arr.shape, lambda b, i, _n=n: (0,) * _n)

    wt_names = ("ln1_w", "ln1_b", "wq", "bq", "wkv", "bkv", "wo", "bo",
                "ln2_w", "ln2_b", "w1", "b1", "w2", "b2")
    wts = [params[n] for n in wt_names]

    kernel = functools.partial(sasrec_fused_kernel, num_heads=NH)
    pos_out, neg_out = pl.pallas_call(
        kernel,
        out_shape=(jax.ShapeDtypeStruct((B, L), jnp.float32),
                   jax.ShapeDtypeStruct((B, L), jnp.float32)),
        grid=grid,
        in_specs=([batch_spec((L, D)), batch_spec((L, 1)),
                   batch_spec((L, D)), batch_spec((L, D))]
                  + [block_weight_spec(w) for w in wts]
                  + [const_spec(params["ln_f_w"]), const_spec(params["ln_f_b"])]),
        out_specs=(pl.BlockSpec((TB, L), lambda b, i: (b, 0)),
                   pl.BlockSpec((TB, L), lambda b, i: (b, 0))),
        scratch_shapes=[pltpu.VMEM((TB, L, D), jnp.float32)],
        compiler_params=_compiler_params(TB, L, D, vmem_cap),
    )(seqs, padm, pos_e, neg_e, *wts, params["ln_f_w"], params["ln_f_b"])

    return pos_out, neg_out


# ---------------------------------------------------------------------------
# Deterministic synthetic parameter init (shapes from SASRecModel.__init__).
# Per-block weights stacked along axis 0 so the kernel can stream block i per
# grid step.  Matrices stored (in, out) so kernels compute x @ W, in bfloat16
# for MXU-native matmuls (f32 accumulation).  K and V projections are stored
# pre-fused as a single (D, 2D) weight (rows D:3D of torch's in_proj_weight).
# ---------------------------------------------------------------------------
def init_params(key, num_items, D, max_len, num_blocks, num_heads):
    ks = jax.random.split(key, 16)
    f32 = jnp.float32
    bf16 = jnp.bfloat16

    item_emb = 0.05 * jax.random.normal(ks[0], (num_items + 1, D), f32)
    item_emb = item_emb.at[0].set(0.0)           # padding_idx=0 -> zero row
    pos_emb = 0.05 * jax.random.normal(ks[1], (max_len, D), f32)

    def mat(k, fan_out=1):
        return (0.05 * jax.random.normal(k, (num_blocks, D, fan_out * D), f32)).astype(bf16)

    def vec(k, fan_out=1):
        return 0.01 * jax.random.normal(k, (num_blocks, 1, fan_out * D), f32)

    return dict(
        item_emb=item_emb, pos_emb=pos_emb,
        ln1_w=jnp.ones((num_blocks, 1, D), f32), ln1_b=jnp.zeros((num_blocks, 1, D), f32),
        wq=mat(ks[2]), bq=vec(ks[3]),
        wkv=mat(ks[4], 2), bkv=vec(ks[5], 2),    # fused K|V projection
        wo=mat(ks[6]), bo=vec(ks[7]),
        ln2_w=jnp.ones((num_blocks, 1, D), f32), ln2_b=jnp.zeros((num_blocks, 1, D), f32),
        w1=mat(ks[8]), b1=vec(ks[9]),            # conv_1 (kernel_size=1) as linear
        w2=mat(ks[10]), b2=vec(ks[11]),          # conv_2 (kernel_size=1) as linear
        ln_f_w=jnp.ones((1, D), f32), ln_f_b=jnp.zeros((1, D), f32),
        num_heads=num_heads, num_blocks=num_blocks,
    )


if __name__ == "__main__":
    # small hyperparameters consistent with the module
    B, L, D = 2, 8, 32                  # batch, max_len, num_hidden_units
    num_heads, num_blocks = 2, 2
    num_users, num_items = 10, 50

    key = jax.random.PRNGKey(0)
    pkey, k_log, k_pos, k_neg, k_usr = jax.random.split(key, 5)

    params = init_params(pkey, num_items, D, L, num_blocks, num_heads)

    log_seqs = jax.random.randint(k_log, (B, L), 1, num_items + 1, dtype=jnp.int32)
    log_seqs = log_seqs.at[0, :2].set(0)         # some padded positions
    pos_seqs = jax.random.randint(k_pos, (B, L), 1, num_items + 1, dtype=jnp.int32)
    neg_seqs = jax.random.randint(k_neg, (B, L), 1, num_items + 1, dtype=jnp.int32)
    user_ids = jax.random.randint(k_usr, (B,), 0, num_users, dtype=jnp.int32)

    pos_out, neg_out = sasrec_forward(params, user_ids, log_seqs, pos_seqs, neg_seqs)
    jax.block_until_ready((pos_out, neg_out))

    assert pos_out.shape == (B, L) and neg_out.shape == (B, L)
    assert pos_out.dtype == jnp.float32 and neg_out.dtype == jnp.float32
    assert bool(jnp.all(jnp.isfinite(pos_out))) and bool(jnp.all(jnp.isfinite(neg_out)))
    print("KERNEL_OK")
</pallas_src>

<mosaic_0001>
module attributes {stable_mosaic.version = 11 : i64} {
  func.func @sasrec_fused_kernel(%arg0: i32, %arg1: i32, %arg2: memref<2x8x32xf32, #tpu.memory_space<vmem>>, %arg3: memref<2x8x1xf32, #tpu.memory_space<vmem>>, %arg4: memref<2x8x32xbf16, #tpu.memory_space<vmem>>, %arg5: memref<2x8x32xbf16, #tpu.memory_space<vmem>>, %arg6: memref<1x1x32xf32, #tpu.memory_space<vmem>>, %arg7: memref<1x1x32xf32, #tpu.memory_space<vmem>>, %arg8: memref<1x32x32xbf16, #tpu.memory_space<vmem>>, %arg9: memref<1x1x32xf32, #tpu.memory_space<vmem>>, %arg10: memref<1x32x64xbf16, #tpu.memory_space<vmem>>, %arg11: memref<1x1x64xf32, #tpu.memory_space<vmem>>, %arg12: memref<1x32x32xbf16, #tpu.memory_space<vmem>>, %arg13: memref<1x1x32xf32, #tpu.memory_space<vmem>>, %arg14: memref<1x1x32xf32, #tpu.memory_space<vmem>>, %arg15: memref<1x1x32xf32, #tpu.memory_space<vmem>>, %arg16: memref<1x32x32xbf16, #tpu.memory_space<vmem>>, %arg17: memref<1x1x32xf32, #tpu.memory_space<vmem>>, %arg18: memref<1x32x32xbf16, #tpu.memory_space<vmem>>, %arg19: memref<1x1x32xf32, #tpu.memory_space<vmem>>, %arg20: memref<1x32xf32, #tpu.memory_space<vmem>>, %arg21: memref<1x32xf32, #tpu.memory_space<vmem>>, %arg22: memref<2x8xf32, #tpu.memory_space<vmem>>, %arg23: memref<2x8xf32, #tpu.memory_space<vmem>>, %arg24: memref<2x8x32xf32, #tpu.memory_space<vmem>>) attributes {dimension_semantics = [#tpu.dimension_semantics<parallel>, #tpu.dimension_semantics<arbitrary>], iteration_bounds = array<i64: 1, 2>, scalar_prefetch = 0 : i64, scratch_operands = 1 : i64, tpu.core_type = #tpu.core_type<tc>, window_params = [{transform_indices = @transform_0, window_bounds = array<i64: 2, 8, 32>}, {transform_indices = @transform_1, window_bounds = array<i64: 2, 8, 1>}, {transform_indices = @transform_2, window_bounds = array<i64: 2, 8, 32>}, {transform_indices = @transform_3, window_bounds = array<i64: 2, 8, 32>}, {transform_indices = @transform_4, window_bounds = array<i64: 1, 1, 32>}, {transform_indices = @transform_5, window_bounds = array<i64: 1, 1, 32>}, {transform_indices = @transform_6, window_bounds = array<i64: 1, 32, 32>}, {transform_indices = @transform_7, window_bounds = array<i64: 1, 1, 32>}, {transform_indices = @transform_8, window_bounds = array<i64: 1, 32, 64>}, {transform_indices = @transform_9, window_bounds = array<i64: 1, 1, 64>}, {transform_indices = @transform_10, window_bounds = array<i64: 1, 32, 32>}, {transform_indices = @transform_11, window_bounds = array<i64: 1, 1, 32>}, {transform_indices = @transform_12, window_bounds = array<i64: 1, 1, 32>}, {transform_indices = @transform_13, window_bounds = array<i64: 1, 1, 32>}, {transform_indices = @transform_14, window_bounds = array<i64: 1, 32, 32>}, {transform_indices = @transform_15, window_bounds = array<i64: 1, 1, 32>}, {transform_indices = @transform_16, window_bounds = array<i64: 1, 32, 32>}, {transform_indices = @transform_17, window_bounds = array<i64: 1, 1, 32>}, {pipeline_mode = #tpu.pipeline_mode<synchronous>, transform_indices = @transform_18, window_bounds = array<i64: 1, 32>}, {pipeline_mode = #tpu.pipeline_mode<synchronous>, transform_indices = @transform_19, window_bounds = array<i64: 1, 32>}, {transform_indices = @transform_20, window_bounds = array<i64: 2, 8>}, {transform_indices = @transform_21, window_bounds = array<i64: 2, 8>}]} {
    %c0_i32 = arith.constant 0 : i32
    %0 = arith.cmpi eq, %arg1, %c0_i32 : i32
    %1 = arith.extui %0 : i1 to i32
    %c0_i32_0 = arith.constant 0 : i32
    %2 = arith.cmpi ne, %1, %c0_i32_0 : i32
    scf.if %2 {
      %c0_78 = arith.constant 0 : index
      %c0_79 = arith.constant 0 : index
      %c0_80 = arith.constant 0 : index
      %162 = vector.load %arg2[%c0_78, %c0_79, %c0_80] : memref<2x8x32xf32, #tpu.memory_space<vmem>>, vector<2x8x32xf32>
      %c0_81 = arith.constant 0 : index
      %c0_82 = arith.constant 0 : index
      %c0_83 = arith.constant 0 : index
      %163 = vector.load %arg24[%c0_81, %c0_82, %c0_83] : memref<2x8x32xf32, #tpu.memory_space<vmem>>, vector<2x8x32xf32>
      tpu.vector_store %arg24[%c0_81, %c0_82, %c0_83], %162 {strides = array<i32>} : memref<2x8x32xf32, #tpu.memory_space<vmem>>, vector<2x8x32xf32>,
    } else {
    }
    %c0 = arith.constant 0 : index
    %c0_1 = arith.constant 0 : index
    %c0_2 = arith.constant 0 : index
    %3 = vector.load %arg24[%c0, %c0_1, %c0_2] : memref<2x8x32xf32, #tpu.memory_space<vmem>>, vector<2x8x32xf32>
    %4 = vector.shape_cast %3 : vector<2x8x32xf32> to vector<16x32xf32>
    %c0_3 = arith.constant 0 : index
    %c0_4 = arith.constant 0 : index
    %c0_5 = arith.constant 0 : index
    %5 = vector.load %arg3[%c0_3, %c0_4, %c0_5] : memref<2x8x1xf32, #tpu.memory_space<vmem>>, vector<2x8x1xf32>
    %6 = vector.shape_cast %5 : vector<2x8x1xf32> to vector<16x1xf32>
    %7 = tpu.iota {dimensions = array<i32: 0>} : vector<8x8xi32>
    %8 = tpu.iota {dimensions = array<i32: 1>} : vector<8x8xi32>
    %9 = arith.cmpi sle, %8, %7 : vector<8x8xi32>
    %cst = arith.constant 0.000000e+00 : f32
    %cst_6 = arith.constant -1.000000e+30 : f32
    %10 = vector.broadcast %cst : f32 to vector<8x8xf32>
    %11 = vector.broadcast %cst_6 : f32 to vector<8x8xf32>
    %12 = arith.select %9, %10, %11 : vector<8x8xi1>, vector<8x8xf32>
    %c0_7 = arith.constant 0 : index
    %c0_8 = arith.constant 0 : index
    %c0_9 = arith.constant 0 : index
    %13 = vector.load %arg6[%c0_7, %c0_8, %c0_9] : memref<1x1x32xf32, #tpu.memory_space<vmem>>, vector<1x1x32xf32>
    %14 = vector.shape_cast %13 : vector<1x1x32xf32> to vector<1x32xf32>
    %c0_10 = arith.constant 0 : index
    %c0_11 = arith.constant 0 : index
    %c0_12 = arith.constant 0 : index
    %15 = vector.load %arg7[%c0_10, %c0_11, %c0_12] : memref<1x1x32xf32, #tpu.memory_space<vmem>>, vector<1x1x32xf32>
    %16 = vector.shape_cast %15 : vector<1x1x32xf32> to vector<1x32xf32>
    %cst_13 = arith.constant dense<0.000000e+00> : vector<16xf32>
    %17 = vector.multi_reduction <add>, %4, %cst_13 [1] : vector<16x32xf32> to vector<16xf32>
    %18 = vector.shape_cast %17 : vector<16xf32> to vector<16x1xf32>
    %cst_14 = arith.constant 3.200000e+01 : f32
    %19 = vector.broadcast %cst_14 : f32 to vector<16x1xf32>
    %20 = arith.divf %18, %19 : vector<16x1xf32>
    %21 = vector.broadcast %20 : vector<16x1xf32> to vector<16x32xf32>
    %22 = arith.subf %4, %21 : vector<16x32xf32>
    %23 = arith.mulf %22, %22 : vector<16x32xf32>
    %cst_15 = arith.constant dense<0.000000e+00> : vector<16xf32>
    %24 = vector.multi_reduction <add>, %23, %cst_15 [1] : vector<16x32xf32> to vector<16xf32>
    %25 = vector.shape_cast %24 : vector<16xf32> to vector<16x1xf32>
    %cst_16 = arith.constant 3.200000e+01 : f32
    %26 = vector.broadcast %cst_16 : f32 to vector<16x1xf32>
    %27 = arith.divf %25, %26 : vector<16x1xf32>
    %cst_17 = arith.constant 1.000000e-07 : f32
    %28 = vector.broadcast %cst_17 : f32 to vector<16x1xf32>
    %29 = arith.addf %27, %28 : vector<16x1xf32>
    %30 = math.rsqrt %29 : vector<16x1xf32>
    %31 = vector.broadcast %30 : vector<16x1xf32> to vector<16x32xf32>
    %32 = arith.mulf %22, %31 : vector<16x32xf32>
    %33 = vector.broadcast %14 : vector<1x32xf32> to vector<16x32xf32>
    %34 = arith.mulf %32, %33 : vector<16x32xf32>
    %35 = vector.broadcast %16 : vector<1x32xf32> to vector<16x32xf32>
    %36 = arith.addf %34, %35 : vector<16x32xf32>
    %37 = arith.truncf %36 : vector<16x32xf32> to vector<16x32xbf16>
    %c0_18 = arith.constant 0 : index
    %c0_19 = arith.constant 0 : index
    %c0_20 = arith.constant 0 : index
    %38 = vector.load %arg8[%c0_18, %c0_19, %c0_20] : memref<1x32x32xbf16, #tpu.memory_space<vmem>>, vector<1x32x32xbf16>
    %39 = vector.shape_cast %38 : vector<1x32x32xbf16> to vector<32x32xbf16>
    %cst_21 = arith.constant dense<0.000000e+00> : vector<16x32xf32>
    %40 = tpu.matmul %37, %39, %cst_21 {dimension_numbers = #tpu.dot_dimension_numbers<[1], [0], [0], [1], [0, 0, 1, 1], [], []>} : vector<16x32xbf16>, vector<32x32xbf16>, vector<16x32xf32> -> vector<16x32xf32>
    %c0_22 = arith.constant 0 : index
    %c0_23 = arith.constant 0 : index
    %c0_24 = arith.constant 0 : index
    %41 = vector.load %arg9[%c0_22, %c0_23, %c0_24] : memref<1x1x32xf32, #tpu.memory_space<vmem>>, vector<1x1x32xf32>
    %42 = vector.shape_cast %41 : vector<1x1x32xf32> to vector<1x32xf32>
    %43 = vector.broadcast %42 : vector<1x32xf32> to vector<16x32xf32>
    %44 = arith.addf %40, %43 : vector<16x32xf32>
    %cst_25 = arith.constant 2.500000e-01 : f32
    %45 = vector.broadcast %cst_25 : f32 to vector<16x32xf32>
    %46 = arith.mulf %44, %45 : vector<16x32xf32>
    %47 = arith.truncf %46 : vector<16x32xf32> to vector<16x32xbf16>
    %48 = vector.shape_cast %47 : vector<16x32xbf16> to vector<2x8x32xbf16>
    %49 = arith.truncf %4 : vector<16x32xf32> to vector<16x32xbf16>
    %c0_26 = arith.constant 0 : index
    %c0_27 = arith.constant 0 : index
    %c0_28 = arith.constant 0 : index
    %50 = vector.load %arg10[%c0_26, %c0_27, %c0_28] : memref<1x32x64xbf16, #tpu.memory_space<vmem>>, vector<1x32x64xbf16>
    %51 = vector.shape_cast %50 : vector<1x32x64xbf16> to vector<32x64xbf16>
    %cst_29 = arith.constant dense<0.000000e+00> : vector<16x64xf32>
    %52 = tpu.matmul %49, %51, %cst_29 {dimension_numbers = #tpu.dot_dimension_numbers<[1], [0], [0], [1], [0, 0, 1, 1], [], []>} : vector<16x32xbf16>, vector<32x64xbf16>, vector<16x64xf32> -> vector<16x64xf32>
    %c0_30 = arith.constant 0 : index
    %c0_31 = arith.constant 0 : index
    %c0_32 = arith.constant 0 : index
    %53 = vector.load %arg11[%c0_30, %c0_31, %c0_32] : memref<1x1x64xf32, #tpu.memory_space<vmem>>, vector<1x1x64xf32>
    %54 = vector.shape_cast %53 : vector<1x1x64xf32> to vector<1x64xf32>
    %55 = vector.broadcast %54 : vector<1x64xf32> to vector<16x64xf32>
    %56 = arith.addf %52, %55 : vector<16x64xf32>
    %57 = vector.extract_strided_slice %56 {offsets = [0, 0], sizes = [16, 32], strides = [1, 1]} : vector<16x64xf32> to vector<16x32xf32>
    %58 = arith.truncf %57 : vector<16x32xf32> to vector<16x32xbf16>
    %59 = vector.shape_cast %58 : vector<16x32xbf16> to vector<2x8x32xbf16>
    %60 = vector.extract_strided_slice %56 {offsets = [0, 32], sizes = [16, 32], strides = [1, 1]} : vector<16x64xf32> to vector<16x32xf32>
    %61 = arith.truncf %60 : vector<16x32xf32> to vector<16x32xbf16>
    %62 = vector.shape_cast %61 : vector<16x32xbf16> to vector<2x8x32xbf16>
    %63 = vector.extract_strided_slice %48 {offsets = [0, 0, 0], sizes = [2, 8, 16], strides = [1, 1, 1]} : vector<2x8x32xbf16> to vector<2x8x16xbf16>
    %64 = vector.extract_strided_slice %59 {offsets = [0, 0, 0], sizes = [2, 8, 16], strides = [1, 1, 1]} : vector<2x8x32xbf16> to vector<2x8x16xbf16>
    "tpu.trace_start"() <{level = 10 : i32, message = "bld,bmd->blm"}> : () -> ()
    %cst_33 = arith.constant dense<0.000000e+00> : vector<2x8x8xf32>
    %65 = tpu.matmul %63, %64, %cst_33 {dimension_numbers = #tpu.dot_dimension_numbers<[2], [2], [1], [1], [0, 0, 0, 1, 1, 1], [0], [0]>} : vector<2x8x16xbf16>, vector<2x8x16xbf16>, vector<2x8x8xf32> -> vector<2x8x8xf32>
    "tpu.trace_stop"() : () -> ()
    %66 = vector.shape_cast %12 : vector<8x8xf32> to vector<1x8x8xf32>
    %67 = vector.broadcast %66 : vector<1x8x8xf32> to vector<2x8x8xf32>
    %68 = arith.addf %65, %67 : vector<2x8x8xf32>
    %cst_34 = arith.constant dense<0xFF800000> : vector<2x8xf32>
    %69 = vector.multi_reduction <maximumf>, %68, %cst_34 [2] : vector<2x8x8xf32> to vector<2x8xf32>
    %70 = vector.shape_cast %69 : vector<2x8xf32> to vector<2x8x1xf32>
    %71 = vector.broadcast %70 : vector<2x8x1xf32> to vector<2x8x8xf32>
    %72 = arith.subf %68, %71 : vector<2x8x8xf32>
    %73 = math.exp %72 : vector<2x8x8xf32>
    %cst_35 = arith.constant dense<0.000000e+00> : vector<2x8xf32>
    %74 = vector.multi_reduction <add>, %73, %cst_35 [2] : vector<2x8x8xf32> to vector<2x8xf32>
    %75 = vector.shape_cast %74 : vector<2x8xf32> to vector<2x8x1xf32>
    %76 = arith.truncf %73 : vector<2x8x8xf32> to vector<2x8x8xbf16>
    %77 = vector.extract_strided_slice %62 {offsets = [0, 0, 0], sizes = [2, 8, 16], strides = [1, 1, 1]} : vector<2x8x32xbf16> to vector<2x8x16xbf16>
    "tpu.trace_start"() <{level = 10 : i32, message = "blm,bmd->bld"}> : () -> ()
    %cst_36 = arith.constant dense<0.000000e+00> : vector<2x8x16xf32>
    %78 = tpu.matmul %76, %77, %cst_36 {dimension_numbers = #tpu.dot_dimension_numbers<[2], [1], [1], [2], [0, 0, 0, 1, 1, 2], [0], [0]>} : vector<2x8x8xbf16>, vector<2x8x16xbf16>, vector<2x8x16xf32> -> vector<2x8x16xf32>
    "tpu.trace_stop"() : () -> ()
    %79 = tpu.reciprocal %75 {approx = true} : vector<2x8x1xf32> -> vector<2x8x1xf32>
    %80 = vector.broadcast %79 : vector<2x8x1xf32> to vector<2x8x16xf32>
    %81 = arith.mulf %78, %80 : vector<2x8x16xf32>
    %82 = vector.extract_strided_slice %48 {offsets = [0, 0, 16], sizes = [2, 8, 16], strides = [1, 1, 1]} : vector<2x8x32xbf16> to vector<2x8x16xbf16>
    %83 = vector.extract_strided_slice %59 {offsets = [0, 0, 16], sizes = [2, 8, 16], strides = [1, 1, 1]} : vector<2x8x32xbf16> to vector<2x8x16xbf16>
    "tpu.trace_start"() <{level = 10 : i32, message = "bld,bmd->blm"}> : () -> ()
    %cst_37 = arith.constant dense<0.000000e+00> : vector<2x8x8xf32>
    %84 = tpu.matmul %82, %83, %cst_37 {dimension_numbers = #tpu.dot_dimension_numbers<[2], [2], [1], [1], [0, 0, 0, 1, 1, 1], [0], [0]>} : vector<2x8x16xbf16>, vector<2x8x16xbf16>, vector<2x8x8xf32> -> vector<2x8x8xf32>
    "tpu.trace_stop"() : () -> ()
    %85 = vector.shape_cast %12 : vector<8x8xf32> to vector<1x8x8xf32>
    %86 = vector.broadcast %85 : vector<1x8x8xf32> to vector<2x8x8xf32>
    %87 = arith.addf %84, %86 : vector<2x8x8xf32>
    %cst_38 = arith.constant dense<0xFF800000> : vector<2x8xf32>
    %88 = vector.multi_reduction <maximumf>, %87, %cst_38 [2] : vector<2x8x8xf32> to vector<2x8xf32>
    %89 = vector.shape_cast %88 : vector<2x8xf32> to vector<2x8x1xf32>
    %90 = vector.broadcast %89 : vector<2x8x1xf32> to vector<2x8x8xf32>
    %91 = arith.subf %87, %90 : vector<2x8x8xf32>
    %92 = math.exp %91 : vector<2x8x8xf32>
    %cst_39 = arith.constant dense<0.000000e+00> : vector<2x8xf32>
    %93 = vector.multi_reduction <add>, %92, %cst_39 [2] : vector<2x8x8xf32> to vector<2x8xf32>
    %94 = vector.shape_cast %93 : vector<2x8xf32> to vector<2x8x1xf32>
    %95 = arith.truncf %92 : vector<2x8x8xf32> to vector<2x8x8xbf16>
    %96 = vector.extract_strided_slice %62 {offsets = [0, 0, 16], sizes = [2, 8, 16], strides = [1, 1, 1]} : vector<2x8x32xbf16> to vector<2x8x16xbf16>
    "tpu.trace_start"() <{level = 10 : i32, message = "blm,bmd->bld"}> : () -> ()
    %cst_40 = arith.constant dense<0.000000e+00> : vector<2x8x16xf32>
    %97 = tpu.matmul %95, %96, %cst_40 {dimension_numbers = #tpu.dot_dimension_numbers<[2], [1], [1], [2], [0, 0, 0, 1, 1, 2], [0], [0]>} : vector<2x8x8xbf16>, vector<2x8x16xbf16>, vector<2x8x16xf32> -> vector<2x8x16xf32>
    "tpu.trace_stop"() : () -> ()
    %98 = tpu.reciprocal %94 {approx = true} : vector<2x8x1xf32> -> vector<2x8x1xf32>
    %99 = vector.broadcast %98 : vector<2x8x1xf32> to vector<2x8x16xf32>
    %100 = arith.mulf %97, %99 : vector<2x8x16xf32>
    %101 = tpu.concatenate %81, %100 in 2 : vector<2x8x16xf32>, vector<2x8x16xf32> -> vector<2x8x32xf32>
    %102 = vector.shape_cast %101 : vector<2x8x32xf32> to vector<16x32xf32>
    %103 = arith.truncf %102 : vector<16x32xf32> to vector<16x32xbf16>
    %c0_41 = arith.constant 0 : index
    %c0_42 = arith.constant 0 : index
    %c0_43 = arith.constant 0 : index
    %104 = vector.load %arg12[%c0_41, %c0_42, %c0_43] : memref<1x32x32xbf16, #tpu.memory_space<vmem>>, vector<1x32x32xbf16>
    %105 = vector.shape_cast %104 : vector<1x32x32xbf16> to vector<32x32xbf16>
    %cst_44 = arith.constant dense<0.000000e+00> : vector<16x32xf32>
    %106 = tpu.matmul %103, %105, %cst_44 {dimension_numbers = #tpu.dot_dimension_numbers<[1], [0], [0], [1], [0, 0, 1, 1], [], []>} : vector<16x32xbf16>, vector<32x32xbf16>, vector<16x32xf32> -> vector<16x32xf32>
    %c0_45 = arith.constant 0 : index
    %c0_46 = arith.constant 0 : index
    %c0_47 = arith.constant 0 : index
    %107 = vector.load %arg13[%c0_45, %c0_46, %c0_47] : memref<1x1x32xf32, #tpu.memory_space<vmem>>, vector<1x1x32xf32>
    %108 = vector.shape_cast %107 : vector<1x1x32xf32> to vector<1x32xf32>
    %109 = vector.broadcast %108 : vector<1x32xf32> to vector<16x32xf32>
    %110 = arith.addf %106, %109 : vector<16x32xf32>
    %111 = arith.addf %36, %110 : vector<16x32xf32>
    %c0_48 = arith.constant 0 : index
    %c0_49 = arith.constant 0 : index
    %c0_50 = arith.constant 0 : index
    %112 = vector.load %arg14[%c0_48, %c0_49, %c0_50] : memref<1x1x32xf32, #tpu.memory_space<vmem>>, vector<1x1x32xf32>
    %113 = vector.shape_cast %112 : vector<1x1x32xf32> to vector<1x32xf32>
    %c0_51 = arith.constant 0 : index
    %c0_52 = arith.constant 0 : index
    %c0_53 = arith.constant 0 : index
    %114 = vector.load %arg15[%c0_51, %c0_52, %c0_53] : memref<1x1x32xf32, #tpu.memory_space<vmem>>, vector<1x1x32xf32>
    %115 = vector.shape_cast %114 : vector<1x1x32xf32> to vector<1x32xf32>
    %cst_54 = arith.constant dense<0.000000e+00> : vector<16xf32>
    %116 = vector.multi_reduction <add>, %111, %cst_54 [1] : vector<16x32xf32> to vector<16xf32>
    %117 = vector.shape_cast %116 : vector<16xf32> to vector<16x1xf32>
    %cst_55 = arith.constant 3.200000e+01 : f32
    %118 = vector.broadcast %cst_55 : f32 to vector<16x1xf32>
    %119 = arith.divf %117, %118 : vector<16x1xf32>
    %120 = vector.broadcast %119 : vector<16x1xf32> to vector<16x32xf32>
    %121 = arith.subf %111, %120 : vector<16x32xf32>
    %122 = arith.mulf %121, %121 : vector<16x32xf32>
    %cst_56 = arith.constant dense<0.000000e+00> : vector<16xf32>
    %123 = vector.multi_reduction <add>, %122, %cst_56 [1] : vector<16x32xf32> to vector<16xf32>
    %124 = vector.shape_cast %123 : vector<16xf32> to vector<16x1xf32>
    %cst_57 = arith.constant 3.200000e+01 : f32
    %125 = vector.broadcast %cst_57 : f32 to vector<16x1xf32>
    %126 = arith.divf %124, %125 : vector<16x1xf32>
    %cst_58 = arith.constant 1.000000e-07 : f32
    %127 = vector.broadcast %cst_58 : f32 to vector<16x1xf32>
    %128 = arith.addf %126, %127 : vector<16x1xf32>
    %129 = math.rsqrt %128 : vector<16x1xf32>
    %130 = vector.broadcast %129 : vector<16x1xf32> to vector<16x32xf32>
    %131 = arith.mulf %121, %130 : vector<16x32xf32>
    %132 = vector.broadcast %113 : vector<1x32xf32> to vector<16x32xf32>
    %133 = arith.mulf %131, %132 : vector<16x32xf32>
    %134 = vector.broadcast %115 : vector<1x32xf32> to vector<16x32xf32>
    %135 = arith.addf %133, %134 : vector<16x32xf32>
    %136 = arith.truncf %135 : vector<16x32xf32> to vector<16x32xbf16>
    %c0_59 = arith.constant 0 : index
    %c0_60 = arith.constant 0 : index
    %c0_61 = arith.constant 0 : index
    %137 = vector.load %arg16[%c0_59, %c0_60, %c0_61] : memref<1x32x32xbf16, #tpu.memory_space<vmem>>, vector<1x32x32xbf16>
    %138 = vector.shape_cast %137 : vector<1x32x32xbf16> to vector<32x32xbf16>
    %cst_62 = arith.constant dense<0.000000e+00> : vector<16x32xf32>
    %139 = tpu.matmul %136, %138, %cst_62 {dimension_numbers = #tpu.dot_dimension_numbers<[1], [0], [0], [1], [0, 0, 1, 1], [], []>} : vector<16x32xbf16>, vector<32x32xbf16>, vector<16x32xf32> -> vector<16x32xf32>
    %c0_63 = arith.constant 0 : index
    %c0_64 = arith.constant 0 : index
    %c0_65 = arith.constant 0 : index
    %140 = vector.load %arg17[%c0_63, %c0_64, %c0_65] : memref<1x1x32xf32, #tpu.memory_space<vmem>>, vector<1x1x32xf32>
    %141 = vector.shape_cast %140 : vector<1x1x32xf32> to vector<1x32xf32>
    %142 = vector.broadcast %141 : vector<1x32xf32> to vector<16x32xf32>
    %143 = arith.addf %139, %142 : vector<16x32xf32>
    %cst_66 = arith.constant 0.000000e+00 : f32
    %144 = vector.broadcast %cst_66 : f32 to vector<16x32xf32>
    %145 = arith.maximumf %143, %144 : vector<16x32xf32>
    %146 = arith.truncf %145 : vector<16x32xf32> to vector<16x32xbf16>
    %c0_67 = arith.constant 0 : index
    %c0_68 = arith.constant 0 : index
    %c0_69 = arith.constant 0 : index
    %147 = vector.load %arg18[%c0_67, %c0_68, %c0_69] : memref<1x32x32xbf16, #tpu.memory_space<vmem>>, vector<1x32x32xbf16>
    %148 = vector.shape_cast %147 : vector<1x32x32xbf16> to vector<32x32xbf16>
    %cst_70 = arith.constant dense<0.000000e+00> : vector<16x32xf32>
    %149 = tpu.matmul %146, %148, %cst_70 {dimension_numbers = #tpu.dot_dimension_numbers<[1], [0], [0], [1], [0, 0, 1, 1], [], []>} : vector<16x32xbf16>, vector<32x32xbf16>, vector<16x32xf32> -> vector<16x32xf32>
    %c0_71 = arith.constant 0 : index
    %c0_72 = arith.constant 0 : index
    %c0_73 = arith.constant 0 : index
    %150 = vector.load %arg19[%c0_71, %c0_72, %c0_73] : memref<1x1x32xf32, #tpu.memory_space<vmem>>, vector<1x1x32xf32>
    %151 = vector.shape_cast %150 : vector<1x1x32xf32> to vector<1x32xf32>
    %152 = vector.broadcast %151 : vector<1x32xf32> to vector<16x32xf32>
    %153 = arith.addf %149, %152 : vector<16x32xf32>
    %154 = arith.addf %153, %135 : vector<16x32xf32>
    %155 = vector.broadcast %6 : vector<16x1xf32> to vector<16x32xf32>
    %156 = arith.mulf %154, %155 : vector<16x32xf32>
    %157 = vector.shape_cast %156 : vector<16x32xf32> to vector<2x8x32xf32>
    %c0_74 = arith.constant 0 : index
    %c0_75 = arith.constant 0 : index
    %c0_76 = arith.constant 0 : index
    %158 = vector.load %arg24[%c0_74, %c0_75, %c0_76] : memref<2x8x32xf32, #tpu.memory_space<vmem>>, vector<2x8x32xf32>
    tpu.vector_store %arg24[%c0_74, %c0_75, %c0_76], %157 {strides = array<i32>} : memref<2x8x32xf32, #tpu.memory_space<vmem>>, vector<2x8x32xf32>,
    %c1_i32 = arith.constant 1 : i32
    %159 = arith.cmpi eq, %arg1, %c1_i32 : i32
    %160 = arith.extui %159 : i1 to i32
    %c0_i32_77 = arith.constant 0 : i32
    %161 = arith.cmpi ne, %160, %c0_i32_77 : i32
    scf.if %161 {
      %c0_78 = arith.constant 0 : index
      %c0_79 = arith.constant 0 : index
      %162 = vector.load %arg20[%c0_78, %c0_79] : memref<1x32xf32, #tpu.memory_space<vmem>>, vector<1x32xf32>
      %c0_80 = arith.constant 0 : index
      %c0_81 = arith.constant 0 : index
      %163 = vector.load %arg21[%c0_80, %c0_81] : memref<1x32xf32, #tpu.memory_space<vmem>>, vector<1x32xf32>
      %cst_82 = arith.constant dense<0.000000e+00> : vector<16xf32>
      %164 = vector.multi_reduction <add>, %156, %cst_82 [1] : vector<16x32xf32> to vector<16xf32>
      %165 = vector.shape_cast %164 : vector<16xf32> to vector<16x1xf32>
      %cst_83 = arith.constant 3.200000e+01 : f32
      %166 = vector.broadcast %cst_83 : f32 to vector<16x1xf32>
      %167 = arith.divf %165, %166 : vector<16x1xf32>
      %168 = vector.broadcast %167 : vector<16x1xf32> to vector<16x32xf32>
      %169 = arith.subf %156, %168 : vector<16x32xf32>
      %170 = arith.mulf %169, %169 : vector<16x32xf32>
      %cst_84 = arith.constant dense<0.000000e+00> : vector<16xf32>
      %171 = vector.multi_reduction <add>, %170, %cst_84 [1] : vector<16x32xf32> to vector<16xf32>
      %172 = vector.shape_cast %171 : vector<16xf32> to vector<16x1xf32>
      %cst_85 = arith.constant 3.200000e+01 : f32
      %173 = vector.broadcast %cst_85 : f32 to vector<16x1xf32>
      %174 = arith.divf %172, %173 : vector<16x1xf32>
      %cst_86 = arith.constant 9.99999993E-9 : f32
      %175 = vector.broadcast %cst_86 : f32 to vector<16x1xf32>
      %176 = arith.addf %174, %175 : vector<16x1xf32>
      %177 = math.rsqrt %176 : vector<16x1xf32>
      %178 = vector.broadcast %177 : vector<16x1xf32> to vector<16x32xf32>
      %179 = arith.mulf %169, %178 : vector<16x32xf32>
      %180 = vector.broadcast %162 : vector<1x32xf32> to vector<16x32xf32>
      %181 = arith.mulf %179, %180 : vector<16x32xf32>
      %182 = vector.broadcast %163 : vector<1x32xf32> to vector<16x32xf32>
      %183 = arith.addf %181, %182 : vector<16x32xf32>
      %184 = vector.shape_cast %183 : vector<16x32xf32> to vector<2x8x32xf32>
      %c0_87 = arith.constant 0 : index
      %c0_88 = arith.constant 0 : index
      %c0_89 = arith.constant 0 : index
      %185 = vector.load %arg4[%c0_87, %c0_88, %c0_89] : memref<2x8x32xbf16, #tpu.memory_space<vmem>>, vector<2x8x32xbf16>
      %186 = arith.extf %185 : vector<2x8x32xbf16> to vector<2x8x32xf32>
      %187 = arith.mulf %184, %186 : vector<2x8x32xf32>
      %cst_90 = arith.constant dense<0.000000e+00> : vector<2x8xf32>
      %188 = vector.multi_reduction <add>, %187, %cst_90 [2] : vector<2x8x32xf32> to vector<2x8xf32>
      %c0_91 = arith.constant 0 : index
      %c0_92 = arith.constant 0 : index
      %189 = vector.load %arg22[%c0_91, %c0_92] : memref<2x8xf32, #tpu.memory_space<vmem>>, vector<2x8xf32>
      tpu.vector_store %arg22[%c0_91, %c0_92], %188 {strides = array<i32>} : memref<2x8xf32, #tpu.memory_space<vmem>>, vector<2x8xf32>,
      %c0_93 = arith.constant 0 : index
      %c0_94 = arith.constant 0 : index
      %c0_95 = arith.constant 0 : index
      %190 = vector.load %arg5[%c0_93, %c0_94, %c0_95] : memref<2x8x32xbf16, #tpu.memory_space<vmem>>, vector<2x8x32xbf16>
      %191 = arith.extf %190 : vector<2x8x32xbf16> to vector<2x8x32xf32>
      %192 = arith.mulf %184, %191 : vector<2x8x32xf32>
      %cst_96 = arith.constant dense<0.000000e+00> : vector<2x8xf32>
      %193 = vector.multi_reduction <add>, %192, %cst_96 [2] : vector<2x8x32xf32> to vector<2x8xf32>
      %c0_97 = arith.constant 0 : index
      %c0_98 = arith.constant 0 : index
      %194 = vector.load %arg23[%c0_97, %c0_98] : memref<2x8xf32, #tpu.memory_space<vmem>>, vector<2x8xf32>
      tpu.vector_store %arg23[%c0_97, %c0_98], %193 {strides = array<i32>} : memref<2x8xf32, #tpu.memory_space<vmem>>, vector<2x8xf32>,
    } else {
    }
    return
  }
  func.func @transform_0(%arg0: i32, %arg1: i32) -> (i32, i32, i32) {
    %c0_i32 = arith.constant 0 : i32
    %c0_i32_0 = arith.constant 0 : i32
    %c0_i32_1 = arith.constant 0 : i32
    return %arg0, %c0_i32, %c0_i32_0 : i32, i32, i32
  }
  func.func @transform_1(%arg0: i32, %arg1: i32) -> (i32, i32, i32) {
    %c0_i32 = arith.constant 0 : i32
    %c0_i32_0 = arith.constant 0 : i32
    %c0_i32_1 = arith.constant 0 : i32
    return %arg0, %c0_i32, %c0_i32_0 : i32, i32, i32
  }
  func.func @transform_2(%arg0: i32, %arg1: i32) -> (i32, i32, i32) {
    %c0_i32 = arith.constant 0 : i32
    %c0_i32_0 = arith.constant 0 : i32
    %c0_i32_1 = arith.constant 0 : i32
    return %arg0, %c0_i32, %c0_i32_0 : i32, i32, i32
  }
  func.func @transform_3(%arg0: i32, %arg1: i32) -> (i32, i32, i32) {
    %c0_i32 = arith.constant 0 : i32
    %c0_i32_0 = arith.constant 0 : i32
    %c0_i32_1 = arith.constant 0 : i32
    return %arg0, %c0_i32, %c0_i32_0 : i32, i32, i32
  }
  func.func @transform_4(%arg0: i32, %arg1: i32) -> (i32, i32, i32) {
    %c0_i32 = arith.constant 0 : i32
    %c0_i32_0 = arith.constant 0 : i32
    %c0_i32_1 = arith.constant 0 : i32
    return %arg1, %c0_i32, %c0_i32_0 : i32, i32, i32
  }
  func.func @transform_5(%arg0: i32, %arg1: i32) -> (i32, i32, i32) {
    %c0_i32 = arith.constant 0 : i32
    %c0_i32_0 = arith.constant 0 : i32
    %c0_i32_1 = arith.constant 0 : i32
    return %arg1, %c0_i32, %c0_i32_0 : i32, i32, i32
  }
  func.func @transform_6(%arg0: i32, %arg1: i32) -> (i32, i32, i32) {
    %c0_i32 = arith.constant 0 : i32
    %c0_i32_0 = arith.constant 0 : i32
    %c0_i32_1 = arith.constant 0 : i32
    return %arg1, %c0_i32, %c0_i32_0 : i32, i32, i32
  }
  func.func @transform_7(%arg0: i32, %arg1: i32) -> (i32, i32, i32) {
    %c0_i32 = arith.constant 0 : i32
    %c0_i32_0 = arith.constant 0 : i32
    %c0_i32_1 = arith.constant 0 : i32
    return %arg1, %c0_i32, %c0_i32_0 : i32, i32, i32
  }
  func.func @transform_8(%arg0: i32, %arg1: i32) -> (i32, i32, i32) {
    %c0_i32 = arith.constant 0 : i32
    %c0_i32_0 = arith.constant 0 : i32
    %c0_i32_1 = arith.constant 0 : i32
    return %arg1, %c0_i32, %c0_i32_0 : i32, i32, i32
  }
  func.func @transform_9(%arg0: i32, %arg1: i32) -> (i32, i32, i32) {
    %c0_i32 = arith.constant 0 : i32
    %c0_i32_0 = arith.constant 0 : i32
    %c0_i32_1 = arith.constant 0 : i32
    return %arg1, %c0_i32, %c0_i32_0 : i32, i32, i32
  }
  func.func @transform_10(%arg0: i32, %arg1: i32) -> (i32, i32, i32) {
    %c0_i32 = arith.constant 0 : i32
    %c0_i32_0 = arith.constant 0 : i32
    %c0_i32_1 = arith.constant 0 : i32
    return %arg1, %c0_i32, %c0_i32_0 : i32, i32, i32
  }
  func.func @transform_11(%arg0: i32, %arg1: i32) -> (i32, i32, i32) {
    %c0_i32 = arith.constant 0 : i32
    %c0_i32_0 = arith.constant 0 : i32
    %c0_i32_1 = arith.constant 0 : i32
    return %arg1, %c0_i32, %c0_i32_0 : i32, i32, i32
  }
  func.func @transform_12(%arg0: i32, %arg1: i32) -> (i32, i32, i32) {
    %c0_i32 = arith.constant 0 : i32
    %c0_i32_0 = arith.constant 0 : i32
    %c0_i32_1 = arith.constant 0 : i32
    return %arg1, %c0_i32, %c0_i32_0 : i32, i32, i32
  }
  func.func @transform_13(%arg0: i32, %arg1: i32) -> (i32, i32, i32) {
    %c0_i32 = arith.constant 0 : i32
    %c0_i32_0 = arith.constant 0 : i32
    %c0_i32_1 = arith.constant 0 : i32
    return %arg1, %c0_i32, %c0_i32_0 : i32, i32, i32
  }
  func.func @transform_14(%arg0: i32, %arg1: i32) -> (i32, i32, i32) {
    %c0_i32 = arith.constant 0 : i32
    %c0_i32_0 = arith.constant 0 : i32
    %c0_i32_1 = arith.constant 0 : i32
    return %arg1, %c0_i32, %c0_i32_0 : i32, i32, i32
  }
  func.func @transform_15(%arg0: i32, %arg1: i32) -> (i32, i32, i32) {
    %c0_i32 = arith.constant 0 : i32
    %c0_i32_0 = arith.constant 0 : i32
    %c0_i32_1 = arith.constant 0 : i32
    return %arg1, %c0_i32, %c0_i32_0 : i32, i32, i32
  }
  func.func @transform_16(%arg0: i32, %arg1: i32) -> (i32, i32, i32) {
    %c0_i32 = arith.constant 0 : i32
    %c0_i32_0 = arith.constant 0 : i32
    %c0_i32_1 = arith.constant 0 : i32
    return %arg1, %c0_i32, %c0_i32_0 : i32, i32, i32
  }
  func.func @transform_17(%arg0: i32, %arg1: i32) -> (i32, i32, i32) {
    %c0_i32 = arith.constant 0 : i32
    %c0_i32_0 = arith.constant 0 : i32
    %c0_i32_1 = arith.constant 0 : i32
    return %arg1, %c0_i32, %c0_i32_0 : i32, i32, i32
  }
  func.func @transform_18(%arg0: i32, %arg1: i32) -> (i32, i32) {
    %c0_i32 = arith.constant 0 : i32
    %c0_i32_0 = arith.constant 0 : i32
    %c0_i32_1 = arith.constant 0 : i32
    return %c0_i32, %c0_i32_0 : i32, i32
  }
  func.func @transform_19(%arg0: i32, %arg1: i32) -> (i32, i32) {
    %c0_i32 = arith.constant 0 : i32
    %c0_i32_0 = arith.constant 0 : i32
    %c0_i32_1 = arith.constant 0 : i32
    return %c0_i32, %c0_i32_0 : i32, i32
  }
  func.func @transform_20(%arg0: i32, %arg1: i32) -> (i32, i32) {
    %c0_i32 = arith.constant 0 : i32
    %c0_i32_0 = arith.constant 0 : i32
    return %arg0, %c0_i32 : i32, i32
  }
  func.func @transform_21(%arg0: i32, %arg1: i32) -> (i32, i32) {
    %c0_i32 = arith.constant 0 : i32
    %c0_i32_0 = arith.constant 0 : i32
    return %arg0, %c0_i32 : i32, i32
  }
}

</mosaic_0001>

<llo_original>
// kernel: tpu_custom_call.1
$region0: #{tpu_custom_call.1}
  #allocation0 [shape = 'u32[]', space=smem, size = 0x4, offset = 0x4, fixed_abs, tag = 'smem constant byte address 0x4 - core index']
  #allocation1 [shape = 'u32[144,128]{1,0:T(1,128)}', space=vmem, size = 0x12000, scoped, tag = 'internal scratch']
  #allocation2 [shape = 'f32[2,8,32]{2,1,0:T(8,128)}', space=vmem, size = 0x2000, scoped, tag = 'scratch operand']
  %s0 = inlined_call_operand.hbm [shape: f32[2,8,32], index: 0, kind: input, shape index: {}]
  %s1 = inlined_call_operand.vmem [shape: f32[2,8,1], index: 1, kind: input, shape index: {}]
  %s2 = inlined_call_operand.hbm [shape: bf16[2,8,32], index: 2, kind: input, shape index: {}]
  %s3 = inlined_call_operand.hbm [shape: bf16[2,8,32], index: 3, kind: input, shape index: {}]
  %s4 = inlined_call_operand.vmem [shape: f32[2,1,32], index: 4, kind: input, shape index: {}]
  %s5 = inlined_call_operand.hbm [shape: f32[2,1,32], index: 5, kind: input, shape index: {}]
  %s6 = inlined_call_operand.vmem [shape: bf16[2,32,32], index: 6, kind: input, shape index: {}]
  %s7 = inlined_call_operand.hbm [shape: f32[2,1,32], index: 7, kind: input, shape index: {}]
  %s8 = inlined_call_operand.hbm [shape: bf16[2,32,64], index: 8, kind: input, shape index: {}]
  %s9 = inlined_call_operand.hbm [shape: f32[2,1,64], index: 9, kind: input, shape index: {}]
  %s10 = inlined_call_operand.hbm [shape: bf16[2,32,32], index: 10, kind: input, shape index: {}]
  %s11 = inlined_call_operand.hbm [shape: f32[2,1,32], index: 11, kind: input, shape index: {}]
  %s12 = inlined_call_operand.hbm [shape: f32[2,1,32], index: 12, kind: input, shape index: {}]
  %s13 = inlined_call_operand.hbm [shape: f32[2,1,32], index: 13, kind: input, shape index: {}]
  %s14 = inlined_call_operand.vmem [shape: bf16[2,32,32], index: 14, kind: input, shape index: {}]
  %s15 = inlined_call_operand.vmem [shape: f32[2,1,32], index: 15, kind: input, shape index: {}]
  %s16 = inlined_call_operand.hbm [shape: bf16[2,32,32], index: 16, kind: input, shape index: {}]
  %s17 = inlined_call_operand.vmem [shape: f32[2,1,32], index: 17, kind: input, shape index: {}]
  %s18 = inlined_call_operand.vmem [shape: f32[1,32], index: 18, kind: input, shape index: {}]
  %s19 = inlined_call_operand.vmem [shape: f32[1,32], index: 19, kind: input, shape index: {}]
  %s20 = inlined_call_operand.hbm [shape: f32[2,8], index: 20, kind: output, shape index: {0}]
  %s21 = inlined_call_operand.hbm [shape: f32[2,8], index: 21, kind: output, shape index: {1}]
  %22 = xla_tuple %s20, %s21
  %s23 = sld [smem:[#allocation0]]
  $region177: #{tpu_custom_call.1} parent=0
    _
  %s25 = ssub.s32 1, %s23
  %s26 = scalar_select 0, %s25, %s23
  $region1: #{tpu_custom_call.1} parent=0
    #allocation3 [shape = 'u8[8192]{0}', space=vmem, size = 0x2000, scoped, tag = 'input window, operand 0, single buffered']
    #allocation4 [shape = 's32[2]{0}', space=sflag, size = 0x8, scoped, tag = 'scoped memory for tpu_custom_call.1']
    #allocation5 [shape = 's32[2]{0}', space=sflag, size = 0x8, scoped, tag = 'scoped memory for tpu_custom_call.1']
    #allocation6 [shape = 'u8[4096]{0}', space=vmem, size = 0x1000, scoped, tag = 'input window, operand 2, single buffered']
    #allocation7 [shape = 's32[1]{0}', space=sflag, size = 0x4, scoped, tag = 'scoped memory for tpu_custom_call.1']
    #allocation8 [shape = 'u8[4096]{0}', space=vmem, size = 0x1000, scoped, tag = 'input window, operand 3, single buffered']
    #allocation9 [shape = 'u8[1024]{0}', space=vmem, size = 0x400, scoped, tag = 'input window, operand 5']
    #allocation10 [shape = 's32[2]{0}', space=sflag, size = 0x8, scoped, tag = 'scoped memory for tpu_custom_call.1']
    #allocation11 [shape = 'u8[1024]{0}', space=vmem, size = 0x400, scoped, tag = 'input window, operand 7']
    #allocation12 [shape = 'u8[16384]{0}', space=vmem, size = 0x4000, scoped, tag = 'input window, operand 8']
    #allocation13 [shape = 's32[2]{0}', space=sflag, size = 0x8, scoped, tag = 'scoped memory for tpu_custom_call.1']
    #allocation14 [shape = 'u8[1024]{0}', space=vmem, size = 0x400, scoped, tag = 'input window, operand 9']
    #allocation15 [shape = 'u8[16384]{0}', space=vmem, size = 0x4000, scoped, tag = 'input window, operand 10']
    #allocation16 [shape = 's32[2]{0}', space=sflag, size = 0x8, scoped, tag = 'scoped memory for tpu_custom_call.1']
    #allocation17 [shape = 'u8[1024]{0}', space=vmem, size = 0x400, scoped, tag = 'input window, operand 11']
    #allocation18 [shape = 'u8[1024]{0}', space=vmem, size = 0x400, scoped, tag = 'input window, operand 12']
    #allocation19 [shape = 's32[2]{0}', space=sflag, size = 0x8, scoped, tag = 'scoped memory for tpu_custom_call.1']
    #allocation20 [shape = 'u8[1024]{0}', space=vmem, size = 0x400, scoped, tag = 'input window, operand 13']
    #allocation21 [shape = 'u8[16384]{0}', space=vmem, size = 0x4000, scoped, tag = 'input window, operand 16']
    #allocation22 [shape = 's32[2]{0}', space=sflag, size = 0x8, scoped, tag = 'scoped memory for tpu_custom_call.1']
    #allocation23 [shape = 'u8[1024]{0}', space=vmem, size = 0x400, scoped, tag = 'output window, operand 0, single buffered']
    #allocation24 [shape = 'u8[1024]{0}', space=vmem, size = 0x400, scoped, tag = 'output window, operand 1, single buffered']
    #allocation25 [shape = 's32[1]{0}', space=sflag, size = 0x4, scoped, tag = 'scoped memory for tpu_custom_call.1']
    %27 = vsyncpa [#allocation4], 0
    %28 = vsyncpa [#allocation7], 0
    %29 = vsyncpa [#allocation10], 0
    %s30 = scalar_lea.sflag [#allocation10], 1
    %31 = vsyncpa %s30, 0
    %32 = vsyncpa [#allocation13], 0
    %s33 = scalar_lea.sflag [#allocation13], 1
    %34 = vsyncpa %s33, 0
    %35 = vsyncpa [#allocation16], 0
    %s36 = scalar_lea.sflag [#allocation16], 1
    %37 = vsyncpa %s36, 0
    %38 = vsyncpa [#allocation19], 0
    %s39 = scalar_lea.sflag [#allocation19], 1
    %40 = vsyncpa %s39, 0
    %41 = vsyncpa [#allocation22], 0
    %s42 = scalar_lea.sflag [#allocation22], 1
    %43 = vsyncpa %s42, 0
    %44 = vsyncpa [#allocation5], 0
    %45 = vsyncpa [#allocation25], 0
    loop: start=0, step=1, limit=4
    $region2: #{tpu_custom_call.1} parent=1 // loop_pre_header
      _
    $region3: #{tpu_custom_call.1} parent=1 // loop_header
      %s47 = sphi 0, %s51
      %p48 = scmp.ge.s32.totalorder %s47, 4
      %s54 = sphi 0, %s66
      %s55 = sphi 0, %s62
      %s56 = sphi 0, %s54
      %s57 = sphi 0, %s55
      %s58 = sphi 0, %s56
      %s59 = sphi 0, %s57
      %s69 = sphi 0, %s71
      %s72 = sphi 0, %s69
      %s73 = sphi 0, %s72
      %s89 = sphi 0, %s73
      %s95 = sphi 0, %s97
      %s98 = sphi 0, %s95
      %s99 = sphi 0, %s98
      %s115 = sphi 0, %s99
      %s121 = sphi 0, %s123
      %s124 = sphi 0, %s121
      %s125 = sphi 0, %s124
      %s141 = sphi 0, %s125
      %s147 = sphi 0, %s149
      %s150 = sphi 0, %s147
      %s151 = sphi 0, %s150
      %s167 = sphi 0, %s151
      %s173 = sphi 0, %s175
      %s176 = sphi 0, %s173
      %s177 = sphi 0, %s176
      %s193 = sphi 0, %s177
      %s199 = sphi 0, %s201
      %s202 = sphi 0, %s199
      %s203 = sphi 0, %s202
      %s219 = sphi 0, %s203
      %s225 = sphi 0, %s227
      %s228 = sphi 0, %s225
      %s229 = sphi 0, %s228
      %s245 = sphi 0, %s229
      %s251 = sphi 0, %s253
      %s254 = sphi 0, %s251
      %s255 = sphi 0, %s254
      %s271 = sphi 0, %s255
      %s277 = sphi 0, %s279
      %s280 = sphi 0, %s277
      %s281 = sphi 0, %s280
      %s297 = sphi 0, %s281
      %s303 = sphi 0, %s305
      %s306 = sphi 0, %s303
      %s307 = sphi 0, %s306
      %s323 = sphi 0, %s307
      %s329 = sphi 0, %s331
      %s332 = sphi 0, %s329
      %s333 = sphi 0, %s332
      %s349 = sphi 0, %s333
      %s355 = sphi 0, %s357
      %s358 = sphi 0, %s355
      %s359 = sphi 0, %s358
      %s375 = sphi 0, %s359
      %s381 = sphi 0, %s383
      %s384 = sphi 0, %s381
      %s385 = sphi 0, %s384
      %s401 = sphi 0, %s385
      %s407 = sphi 0, %s409
      %s410 = sphi 0, %s407
      %s411 = sphi 0, %s410
      %s427 = sphi 0, %s411
      %s433 = sphi 0, %s435
      %s436 = sphi 0, %s433
      %s437 = sphi 0, %s436
      %s453 = sphi 0, %s437
      %s459 = sphi 0, %s461
      %s462 = sphi 0, %s459
      %s463 = sphi 0, %s462
      %s479 = sphi 0, %s463
      %s485 = sphi 0, %s487
      %s488 = sphi 0, %s485
      %s489 = sphi 0, %s488
      %s505 = sphi 0, %s489
      %s511 = sphi 0, %s513
      %s514 = sphi 0, %s511
      %s515 = sphi 0, %s514
      %s531 = sphi 0, %s515
      %s535 = sphi 0, %s535
      %s537 = sphi 0, %s535
      %s538 = sphi 0, %s537
      %s552 = sphi 0, %s538
      %s556 = sphi 0, %s556
      %s558 = sphi 0, %s556
      %s559 = sphi 0, %s558
      %s573 = sphi 0, %s559
      %s579 = sphi 0, %s581
      %s582 = sphi 0, %s579
      %s583 = sphi 0, %s582
      %s599 = sphi 0, %s583
      %s605 = sphi 0, %s607
      %s608 = sphi 0, %s605
      %s609 = sphi 0, %s608
      %s625 = sphi 0, %s609
    $region4: #{tpu_custom_call.1} parent=1 // loop_header_branch
      %50 = sbr.rel (%p48) target = $region8
    $region5: #{tpu_custom_call.1} parent=1 // loop_body
      %s52 = ssub.s32 %s47, 1
      %s53 = ssub.s32 %s47, 2
      %s60 = sadd.s32 1, %s55
      %p61 = scmp.ge.s32.totalorder %s60, 2
      %s62 = scalar_select %p61, 0, %s60
      %s63 = sadd.s32 1, %s54
      %s64 = scalar_select %p61, %s63, %s54
      %p65 = scmp.ge.s32.totalorder %s64, 1
      %s66 = scalar_select %p65, 0, %s64
      %s67 = ssub.s32 %s54, %s66
      %p68 = scmp.eq.s32.totalorder %s67, 0
      %s70 = sadd.s32 %s69, 1
      %s71 = scalar_select %p68, %s69, %s70
      %p74 = pneg %p68
      %p75 = scmp.eq.s32.totalorder %s47, 1
      %p76 = por %p74, %p75
      %p77 = scmp.ne.s32.totalorder %s69, %s72
      %p78 = scmp.eq.s32.totalorder %s47, 0
      %p79 = por %p77, %p78
      %p80 = scmp.ne.s32.totalorder %s69, %s72
      %p81 = scmp.eq.s32.totalorder %s52, 1
      %p82 = por %p80, %p81
      %p83 = scmp.ne.s32.totalorder %s72, %s73
      %p84 = scmp.eq.s32.totalorder %s52, 0
      %p85 = por %p83, %p84
      %p86 = scmp.ne.s32.totalorder %s72, %s73
      %p87 = scmp.eq.s32.totalorder %s53, 1
      %p88 = por %p86, %p87
      %p90 = scmp.ne.s32.totalorder %s73, %s89
      %p91 = scmp.eq.s32.totalorder %s53, 0
      %p92 = por %p90, %p91
      %s93 = ssub.s32 %s54, %s66
      %p94 = scmp.eq.s32.totalorder %s93, 0
      %s96 = sadd.s32 %s95, 1
      %s97 = scalar_select %p94, %s95, %s96
      %p100 = pneg %p94
      %p101 = scmp.eq.s32.totalorder %s47, 1
      %p102 = por %p100, %p101
      %p103 = scmp.ne.s32.totalorder %s95, %s98
      %p104 = scmp.eq.s32.totalorder %s47, 0
      %p105 = por %p103, %p104
      %p106 = scmp.ne.s32.totalorder %s95, %s98
      %p107 = scmp.eq.s32.totalorder %s52, 1
      %p108 = por %p106, %p107
      %p109 = scmp.ne.s32.totalorder %s98, %s99
      %p110 = scmp.eq.s32.totalorder %s52, 0
      %p111 = por %p109, %p110
      %p112 = scmp.ne.s32.totalorder %s98, %s99
      %p113 = scmp.eq.s32.totalorder %s53, 1
      %p114 = por %p112, %p113
      %p116 = scmp.ne.s32.totalorder %s99, %s115
      %p117 = scmp.eq.s32.totalorder %s53, 0
      %p118 = por %p116, %p117
      %s119 = ssub.s32 %s54, %s66
      %p120 = scmp.eq.s32.totalorder %s119, 0
      %s122 = sadd.s32 %s121, 1
      %s123 = scalar_select %p120, %s121, %s122
      %p126 = pneg %p120
      %p127 = scmp.eq.s32.totalorder %s47, 1
      %p128 = por %p126, %p127
      %p129 = scmp.ne.s32.totalorder %s121, %s124
      %p130 = scmp.eq.s32.totalorder %s47, 0
      %p131 = por %p129, %p130
      %p132 = scmp.ne.s32.totalorder %s121, %s124
      %p133 = scmp.eq.s32.totalorder %s52, 1
      %p134 = por %p132, %p133
      %p135 = scmp.ne.s32.totalorder %s124, %s125
      %p136 = scmp.eq.s32.totalorder %s52, 0
      %p137 = por %p135, %p136
      %p138 = scmp.ne.s32.totalorder %s124, %s125
      %p139 = scmp.eq.s32.totalorder %s53, 1
      %p140 = por %p138, %p139
      %p142 = scmp.ne.s32.totalorder %s125, %s141
      %p143 = scmp.eq.s32.totalorder %s53, 0
      %p144 = por %p142, %p143
      %s145 = ssub.s32 %s54, %s66
      %p146 = scmp.eq.s32.totalorder %s145, 0
      %s148 = sadd.s32 %s147, 1
      %s149 = scalar_select %p146, %s147, %s148
      %p152 = pneg %p146
      %p153 = scmp.eq.s32.totalorder %s47, 1
      %p154 = por %p152, %p153
      %p155 = scmp.ne.s32.totalorder %s147, %s150
      %p156 = scmp.eq.s32.totalorder %s47, 0
      %p157 = por %p155, %p156
      %p158 = scmp.ne.s32.totalorder %s147, %s150
      %p159 = scmp.eq.s32.totalorder %s52, 1
      %p160 = por %p158, %p159
      %p161 = scmp.ne.s32.totalorder %s150, %s151
      %p162 = scmp.eq.s32.totalorder %s52, 0
      %p163 = por %p161, %p162
      %p164 = scmp.ne.s32.totalorder %s150, %s151
      %p165 = scmp.eq.s32.totalorder %s53, 1
      %p166 = por %p164, %p165
      %p168 = scmp.ne.s32.totalorder %s151, %s167
      %p169 = scmp.eq.s32.totalorder %s53, 0
      %p170 = por %p168, %p169
      %s171 = ssub.s32 %s55, %s62
      %p172 = scmp.eq.s32.totalorder %s171, 0
      %s174 = sadd.s32 %s173, 1
      %s175 = scalar_select %p172, %s173, %s174
      %p178 = pneg %p172
      %p179 = scmp.eq.s32.totalorder %s47, 1
      %p180 = por %p178, %p179
      %p181 = scmp.ne.s32.totalorder %s173, %s176
      %p182 = scmp.eq.s32.totalorder %s47, 0
      %p183 = por %p181, %p182
      %p184 = scmp.ne.s32.totalorder %s173, %s176
      %p185 = scmp.eq.s32.totalorder %s52, 1
      %p186 = por %p184, %p185
      %p187 = scmp.ne.s32.totalorder %s176, %s177
      %p188 = scmp.eq.s32.totalorder %s52, 0
      %p189 = por %p187, %p188
      %p190 = scmp.ne.s32.totalorder %s176, %s177
      %p191 = scmp.eq.s32.totalorder %s53, 1
      %p192 = por %p190, %p191
      %p194 = scmp.ne.s32.totalorder %s177, %s193
      %p195 = scmp.eq.s32.totalorder %s53, 0
      %p196 = por %p194, %p195
      %s197 = ssub.s32 %s55, %s62
      %p198 = scmp.eq.s32.totalorder %s197, 0
      %s200 = sadd.s32 %s199, 1
      %s201 = scalar_select %p198, %s199, %s200
      %p204 = pneg %p198
      %p205 = scmp.eq.s32.totalorder %s47, 1
      %p206 = por %p204, %p205
      %p207 = scmp.ne.s32.totalorder %s199, %s202
      %p208 = scmp.eq.s32.totalorder %s47, 0
      %p209 = por %p207, %p208
      %p210 = scmp.ne.s32.totalorder %s199, %s202
      %p211 = scmp.eq.s32.totalorder %s52, 1
      %p212 = por %p210, %p211
      %p213 = scmp.ne.s32.totalorder %s202, %s203
      %p214 = scmp.eq.s32.totalorder %s52, 0
      %p215 = por %p213, %p214
      %p216 = scmp.ne.s32.totalorder %s202, %s203
      %p217 = scmp.eq.s32.totalorder %s53, 1
      %p218 = por %p216, %p217
      %p220 = scmp.ne.s32.totalorder %s203, %s219
      %p221 = scmp.eq.s32.totalorder %s53, 0
      %p222 = por %p220, %p221
      %s223 = ssub.s32 %s55, %s62
      %p224 = scmp.eq.s32.totalorder %s223, 0
      %s226 = sadd.s32 %s225, 1
      %s227 = scalar_select %p224, %s225, %s226
      %p230 = pneg %p224
      %p231 = scmp.eq.s32.totalorder %s47, 1
      %p232 = por %p230, %p231
      %p233 = scmp.ne.s32.totalorder %s225, %s228
      %p234 = scmp.eq.s32.totalorder %s47, 0
      %p235 = por %p233, %p234
      %p236 = scmp.ne.s32.totalorder %s225, %s228
      %p237 = scmp.eq.s32.totalorder %s52, 1
      %p238 = por %p236, %p237
      %p239 = scmp.ne.s32.totalorder %s228, %s229
      %p240 = scmp.eq.s32.totalorder %s52, 0
      %p241 = por %p239, %p240
      %p242 = scmp.ne.s32.totalorder %s228, %s229
      %p243 = scmp.eq.s32.totalorder %s53, 1
      %p244 = por %p242, %p243
      %p246 = scmp.ne.s32.totalorder %s229, %s245
      %p247 = scmp.eq.s32.totalorder %s53, 0
      %p248 = por %p246, %p247
      %s249 = ssub.s32 %s55, %s62
      %p250 = scmp.eq.s32.totalorder %s249, 0
      %s252 = sadd.s32 %s251, 1
      %s253 = scalar_select %p250, %s251, %s252
      %p256 = pneg %p250
      %p257 = scmp.eq.s32.totalorder %s47, 1
      %p258 = por %p256, %p257
      %p259 = scmp.ne.s32.totalorder %s251, %s254
      %p260 = scmp.eq.s32.totalorder %s47, 0
      %p261 = por %p259, %p260
      %p262 = scmp.ne.s32.totalorder %s251, %s254
      %p263 = scmp.eq.s32.totalorder %s52, 1
      %p264 = por %p262, %p263
      %p265 = scmp.ne.s32.totalorder %s254, %s255
      %p266 = scmp.eq.s32.totalorder %s52, 0
      %p267 = por %p265, %p266
      %p268 = scmp.ne.s32.totalorder %s254, %s255
      %p269 = scmp.eq.s32.totalorder %s53, 1
      %p270 = por %p268, %p269
      %p272 = scmp.ne.s32.totalorder %s255, %s271
      %p273 = scmp.eq.s32.totalorder %s53, 0
      %p274 = por %p272, %p273
      %s275 = ssub.s32 %s55, %s62
      %p276 = scmp.eq.s32.totalorder %s275, 0
      %s278 = sadd.s32 %s277, 1
      %s279 = scalar_select %p276, %s277, %s278
      %p282 = pneg %p276
      %p283 = scmp.eq.s32.totalorder %s47, 1
      %p284 = por %p282, %p283
      %p285 = scmp.ne.s32.totalorder %s277, %s280
      %p286 = scmp.eq.s32.totalorder %s47, 0
      %p287 = por %p285, %p286
      %p288 = scmp.ne.s32.totalorder %s277, %s280
      %p289 = scmp.eq.s32.totalorder %s52, 1
      %p290 = por %p288, %p289
      %p291 = scmp.ne.s32.totalorder %s280, %s281
      %p292 = scmp.eq.s32.totalorder %s52, 0
      %p293 = por %p291, %p292
      %p294 = scmp.ne.s32.totalorder %s280, %s281
      %p295 = scmp.eq.s32.totalorder %s53, 1
      %p296 = por %p294, %p295
      %p298 = scmp.ne.s32.totalorder %s281, %s297
      %p299 = scmp.eq.s32.totalorder %s53, 0
      %p300 = por %p298, %p299
      %s301 = ssub.s32 %s55, %s62
      %p302 = scmp.eq.s32.totalorder %s301, 0
      %s304 = sadd.s32 %s303, 1
      %s305 = scalar_select %p302, %s303, %s304
      %p308 = pneg %p302
      %p309 = scmp.eq.s32.totalorder %s47, 1
      %p310 = por %p308, %p309
      %p311 = scmp.ne.s32.totalorder %s303, %s306
      %p312 = scmp.eq.s32.totalorder %s47, 0
      %p313 = por %p311, %p312
      %p314 = scmp.ne.s32.totalorder %s303, %s306
      %p315 = scmp.eq.s32.totalorder %s52, 1
      %p316 = por %p314, %p315
      %p317 = scmp.ne.s32.totalorder %s306, %s307
      %p318 = scmp.eq.s32.totalorder %s52, 0
      %p319 = por %p317, %p318
      %p320 = scmp.ne.s32.totalorder %s306, %s307
      %p321 = scmp.eq.s32.totalorder %s53, 1
      %p322 = por %p320, %p321
      %p324 = scmp.ne.s32.totalorder %s307, %s323
      %p325 = scmp.eq.s32.totalorder %s53, 0
      %p326 = por %p324, %p325
      %s327 = ssub.s32 %s55, %s62
      %p328 = scmp.eq.s32.totalorder %s327, 0
      %s330 = sadd.s32 %s329, 1
      %s331 = scalar_select %p328, %s329, %s330
      %p334 = pneg %p328
      %p335 = scmp.eq.s32.totalorder %s47, 1
      %p336 = por %p334, %p335
      %p337 = scmp.ne.s32.totalorder %s329, %s332
      %p338 = scmp.eq.s32.totalorder %s47, 0
      %p339 = por %p337, %p338
      %p340 = scmp.ne.s32.totalorder %s329, %s332
      %p341 = scmp.eq.s32.totalorder %s52, 1
      %p342 = por %p340, %p341
      %p343 = scmp.ne.s32.totalorder %s332, %s333
      %p344 = scmp.eq.s32.totalorder %s52, 0
      %p345 = por %p343, %p344
      %p346 = scmp.ne.s32.totalorder %s332, %s333
      %p347 = scmp.eq.s32.totalorder %s53, 1
      %p348 = por %p346, %p347
      %p350 = scmp.ne.s32.totalorder %s333, %s349
      %p351 = scmp.eq.s32.totalorder %s53, 0
      %p352 = por %p350, %p351
      %s353 = ssub.s32 %s55, %s62
      %p354 = scmp.eq.s32.totalorder %s353, 0
      %s356 = sadd.s32 %s355, 1
      %s357 = scalar_select %p354, %s355, %s356
      %p360 = pneg %p354
      %p361 = scmp.eq.s32.totalorder %s47, 1
      %p362 = por %p360, %p361
      %p363 = scmp.ne.s32.totalorder %s355, %s358
      %p364 = scmp.eq.s32.totalorder %s47, 0
      %p365 = por %p363, %p364
      %p366 = scmp.ne.s32.totalorder %s355, %s358
      %p367 = scmp.eq.s32.totalorder %s52, 1
      %p368 = por %p366, %p367
      %p369 = scmp.ne.s32.totalorder %s358, %s359
      %p370 = scmp.eq.s32.totalorder %s52, 0
      %p371 = por %p369, %p370
      %p372 = scmp.ne.s32.totalorder %s358, %s359
      %p373 = scmp.eq.s32.totalorder %s53, 1
      %p374 = por %p372, %p373
      %p376 = scmp.ne.s32.totalorder %s359, %s375
      %p377 = scmp.eq.s32.totalorder %s53, 0
      %p378 = por %p376, %p377
      %s379 = ssub.s32 %s55, %s62
      %p380 = scmp.eq.s32.totalorder %s379, 0
      %s382 = sadd.s32 %s381, 1
      %s383 = scalar_select %p380, %s381, %s382
      %p386 = pneg %p380
      %p387 = scmp.eq.s32.totalorder %s47, 1
      %p388 = por %p386, %p387
      %p389 = scmp.ne.s32.totalorder %s381, %s384
      %p390 = scmp.eq.s32.totalorder %s47, 0
      %p391 = por %p389, %p390
      %p392 = scmp.ne.s32.totalorder %s381, %s384
      %p393 = scmp.eq.s32.totalorder %s52, 1
      %p394 = por %p392, %p393
      %p395 = scmp.ne.s32.totalorder %s384, %s385
      %p396 = scmp.eq.s32.totalorder %s52, 0
      %p397 = por %p395, %p396
      %p398 = scmp.ne.s32.totalorder %s384, %s385
      %p399 = scmp.eq.s32.totalorder %s53, 1
      %p400 = por %p398, %p399
      %p402 = scmp.ne.s32.totalorder %s385, %s401
      %p403 = scmp.eq.s32.totalorder %s53, 0
      %p404 = por %p402, %p403
      %s405 = ssub.s32 %s55, %s62
      %p406 = scmp.eq.s32.totalorder %s405, 0
      %s408 = sadd.s32 %s407, 1
      %s409 = scalar_select %p406, %s407, %s408
      %p412 = pneg %p406
      %p413 = scmp.eq.s32.totalorder %s47, 1
      %p414 = por %p412, %p413
      %p415 = scmp.ne.s32.totalorder %s407, %s410
      %p416 = scmp.eq.s32.totalorder %s47, 0
      %p417 = por %p415, %p416
      %p418 = scmp.ne.s32.totalorder %s407, %s410
      %p419 = scmp.eq.s32.totalorder %s52, 1
      %p420 = por %p418, %p419
      %p421 = scmp.ne.s32.totalorder %s410, %s411
      %p422 = scmp.eq.s32.totalorder %s52, 0
      %p423 = por %p421, %p422
      %p424 = scmp.ne.s32.totalorder %s410, %s411
      %p425 = scmp.eq.s32.totalorder %s53, 1
      %p426 = por %p424, %p425
      %p428 = scmp.ne.s32.totalorder %s411, %s427
      %p429 = scmp.eq.s32.totalorder %s53, 0
      %p430 = por %p428, %p429
      %s431 = ssub.s32 %s55, %s62
      %p432 = scmp.eq.s32.totalorder %s431, 0
      %s434 = sadd.s32 %s433, 1
      %s435 = scalar_select %p432, %s433, %s434
      %p438 = pneg %p432
      %p439 = scmp.eq.s32.totalorder %s47, 1
      %p440 = por %p438, %p439
      %p441 = scmp.ne.s32.totalorder %s433, %s436
      %p442 = scmp.eq.s32.totalorder %s47, 0
      %p443 = por %p441, %p442
      %p444 = scmp.ne.s32.totalorder %s433, %s436
      %p445 = scmp.eq.s32.totalorder %s52, 1
      %p446 = por %p444, %p445
      %p447 = scmp.ne.s32.totalorder %s436, %s437
      %p448 = scmp.eq.s32.totalorder %s52, 0
      %p449 = por %p447, %p448
      %p450 = scmp.ne.s32.totalorder %s436, %s437
      %p451 = scmp.eq.s32.totalorder %s53, 1
      %p452 = por %p450, %p451
      %p454 = scmp.ne.s32.totalorder %s437, %s453
      %p455 = scmp.eq.s32.totalorder %s53, 0
      %p456 = por %p454, %p455
      %s457 = ssub.s32 %s55, %s62
      %p458 = scmp.eq.s32.totalorder %s457, 0
      %s460 = sadd.s32 %s459, 1
      %s461 = scalar_select %p458, %s459, %s460
      %p464 = pneg %p458
      %p465 = scmp.eq.s32.totalorder %s47, 1
      %p466 = por %p464, %p465
      %p467 = scmp.ne.s32.totalorder %s459, %s462
      %p468 = scmp.eq.s32.totalorder %s47, 0
      %p469 = por %p467, %p468
      %p470 = scmp.ne.s32.totalorder %s459, %s462
      %p471 = scmp.eq.s32.totalorder %s52, 1
      %p472 = por %p470, %p471
      %p473 = scmp.ne.s32.totalorder %s462, %s463
      %p474 = scmp.eq.s32.totalorder %s52, 0
      %p475 = por %p473, %p474
      %p476 = scmp.ne.s32.totalorder %s462, %s463
      %p477 = scmp.eq.s32.totalorder %s53, 1
      %p478 = por %p476, %p477
      %p480 = scmp.ne.s32.totalorder %s463, %s479
      %p481 = scmp.eq.s32.totalorder %s53, 0
      %p482 = por %p480, %p481
      %s483 = ssub.s32 %s55, %s62
      %p484 = scmp.eq.s32.totalorder %s483, 0
      %s486 = sadd.s32 %s485, 1
      %s487 = scalar_select %p484, %s485, %s486
      %p490 = pneg %p484
      %p491 = scmp.eq.s32.totalorder %s47, 1
      %p492 = por %p490, %p491
      %p493 = scmp.ne.s32.totalorder %s485, %s488
      %p494 = scmp.eq.s32.totalorder %s47, 0
      %p495 = por %p493, %p494
      %p496 = scmp.ne.s32.totalorder %s485, %s488
      %p497 = scmp.eq.s32.totalorder %s52, 1
      %p498 = por %p496, %p497
      %p499 = scmp.ne.s32.totalorder %s488, %s489
      %p500 = scmp.eq.s32.totalorder %s52, 0
      %p501 = por %p499, %p500
      %p502 = scmp.ne.s32.totalorder %s488, %s489
      %p503 = scmp.eq.s32.totalorder %s53, 1
      %p504 = por %p502, %p503
      %p506 = scmp.ne.s32.totalorder %s489, %s505
      %p507 = scmp.eq.s32.totalorder %s53, 0
      %p508 = por %p506, %p507
      %s509 = ssub.s32 %s55, %s62
      %p510 = scmp.eq.s32.totalorder %s509, 0
      %s512 = sadd.s32 %s511, 1
      %s513 = scalar_select %p510, %s511, %s512
      %p516 = pneg %p510
      %p517 = scmp.eq.s32.totalorder %s47, 1
      %p518 = por %p516, %p517
      %p519 = scmp.ne.s32.totalorder %s511, %s514
      %p520 = scmp.eq.s32.totalorder %s47, 0
      %p521 = por %p519, %p520
      %p522 = scmp.ne.s32.totalorder %s511, %s514
      %p523 = scmp.eq.s32.totalorder %s52, 1
      %p524 = por %p522, %p523
      %p525 = scmp.ne.s32.totalorder %s514, %s515
      %p526 = scmp.eq.s32.totalorder %s52, 0
      %p527 = por %p525, %p526
      %p528 = scmp.ne.s32.totalorder %s514, %s515
      %p529 = scmp.eq.s32.totalorder %s53, 1
      %p530 = por %p528, %p529
      %p532 = scmp.ne.s32.totalorder %s515, %s531
      %p533 = scmp.eq.s32.totalorder %s53, 0
      %p534 = por %p532, %p533
      %s536 = sadd.s32 %s535, 1
      %p539 = scmp.eq.s32.totalorder %s47, 1
      %p540 = scmp.ne.s32.totalorder %s535, %s537
      %p541 = scmp.eq.s32.totalorder %s47, 0
      %p542 = por %p540, %p541
      %p543 = scmp.ne.s32.totalorder %s535, %s537
      %p544 = scmp.eq.s32.totalorder %s52, 1
      %p545 = por %p543, %p544
      %p546 = scmp.ne.s32.totalorder %s537, %s538
      %p547 = scmp.eq.s32.totalorder %s52, 0
      %p548 = por %p546, %p547
      %p549 = scmp.ne.s32.totalorder %s537, %s538
      %p550 = scmp.eq.s32.totalorder %s53, 1
      %p551 = por %p549, %p550
      %p553 = scmp.ne.s32.totalorder %s538, %s552
      %p554 = scmp.eq.s32.totalorder %s53, 0
      %p555 = por %p553, %p554
      %s557 = sadd.s32 %s556, 1
      %p560 = scmp.eq.s32.totalorder %s47, 1
      %p561 = scmp.ne.s32.totalorder %s556, %s558
      %p562 = scmp.eq.s32.totalorder %s47, 0
      %p563 = por %p561, %p562
      %p564 = scmp.ne.s32.totalorder %s556, %s558
      %p565 = scmp.eq.s32.totalorder %s52, 1
      %p566 = por %p564, %p565
      %p567 = scmp.ne.s32.totalorder %s558, %s559
      %p568 = scmp.eq.s32.totalorder %s52, 0
      %p569 = por %p567, %p568
      %p570 = scmp.ne.s32.totalorder %s558, %s559
      %p571 = scmp.eq.s32.totalorder %s53, 1
      %p572 = por %p570, %p571
      %p574 = scmp.ne.s32.totalorder %s559, %s573
      %p575 = scmp.eq.s32.totalorder %s53, 0
      %p576 = por %p574, %p575
      %s577 = ssub.s32 %s54, %s66
      %p578 = scmp.eq.s32.totalorder %s577, 0
      %s580 = sadd.s32 %s579, 1
      %s581 = scalar_select %p578, %s579, %s580
      %p584 = pneg %p578
      %p585 = scmp.eq.s32.totalorder %s47, 1
      %p586 = por %p584, %p585
      %p587 = scmp.ne.s32.totalorder %s579, %s582
      %p588 = scmp.eq.s32.totalorder %s47, 0
      %p589 = por %p587, %p588
      %p590 = scmp.ne.s32.totalorder %s579, %s582
      %p591 = scmp.eq.s32.totalorder %s52, 1
      %p592 = por %p590, %p591
      %p593 = scmp.ne.s32.totalorder %s582, %s583
      %p594 = scmp.eq.s32.totalorder %s52, 0
      %p595 = por %p593, %p594
      %p596 = scmp.ne.s32.totalorder %s582, %s583
      %p597 = scmp.eq.s32.totalorder %s53, 1
      %p598 = por %p596, %p597
      %p600 = scmp.ne.s32.totalorder %s583, %s599
      %p601 = scmp.eq.s32.totalorder %s53, 0
      %p602 = por %p600, %p601
      %s603 = ssub.s32 %s54, %s66
      %p604 = scmp.eq.s32.totalorder %s603, 0
      %s606 = sadd.s32 %s605, 1
      %s607 = scalar_select %p604, %s605, %s606
      %p610 = pneg %p604
      %p611 = scmp.eq.s32.totalorder %s47, 1
      %p612 = por %p610, %p611
      %p613 = scmp.ne.s32.totalorder %s605, %s608
      %p614 = scmp.eq.s32.totalorder %s47, 0
      %p615 = por %p613, %p614
      %p616 = scmp.ne.s32.totalorder %s605, %s608
      %p617 = scmp.eq.s32.totalorder %s52, 1
      %p618 = por %p616, %p617
      %p619 = scmp.ne.s32.totalorder %s608, %s609
      %p620 = scmp.eq.s32.totalorder %s52, 0
      %p621 = por %p619, %p620
      %p622 = scmp.ne.s32.totalorder %s608, %s609
      %p623 = scmp.eq.s32.totalorder %s53, 1
      %p624 = por %p622, %p623
      %p626 = scmp.ne.s32.totalorder %s609, %s625
      %p627 = scmp.eq.s32.totalorder %s53, 0
      %p628 = por %p626, %p627
      %p629 = scmp.le.s32.totalorder 1, %s47
      %p630 = scmp.lt.s32.totalorder %s47, 3
      %p631 = pnand %p629, %p630
      %p632 = pneg %p631
      // Predicated region
      $region9: #{tpu_custom_call.1} parent=5 // pred_check
        _
      $region10: #{tpu_custom_call.1} parent=5 // pred_check_branch
        %634 = sbr.rel (%p631) target = $region12
      $region11: #{tpu_custom_call.1} parent=5 // pred_region
        %s635 = ssub.s32 %s47, 1
        // Predicated region
        $region13: #{tpu_custom_call.1} parent=11 // pred_check
          %p636 = pneg %p85
        $region14: #{tpu_custom_call.1} parent=11 // pred_check_branch
          %638 = sbr.rel (%p636) target = $region16
        $region15: #{tpu_custom_call.1} parent=11 // pred_region
          %s639 = smul.u32 2, %s56
          %s641 = ssub.s32 256, 256
          %642 = vsyncadd [#allocation4], %s641
          %s643 = smul.addr %s639, 128
          %s644 = scalar_lea.hbm %s0, %s643
          %s645 = sshll.u32 [#allocation3], 4
          %s646 = int_to_ptr.vmem [resolvable:$true] %s645
          %651 = dma.hbm_to_vmem [thread:$0]  %s644, 256, %s646, [#allocation4], 128, 128, 8
        $region16: #{tpu_custom_call.1} parent=11 // pred_fallthru
          _
        // Predicated region
        $region17: #{tpu_custom_call.1} parent=11 // pred_check
          %p652 = pneg %p111
        $region18: #{tpu_custom_call.1} parent=11 // pred_check_branch
          %654 = sbr.rel (%p652) target = $region20
        $region19: #{tpu_custom_call.1} parent=11 // pred_region
          %s655 = smul.u32 2, %s56
          %p656 = scmp.lt.s32.totalorder %s655, 1
          %s657 = scalar_select %p656, %s655, 1
          %s658 = smul.addr %s657, 8
          %s659 = scalar_lea.vmem %s1, %s658
          %s660 = smul.u32 2, %s56
        $region20: #{tpu_custom_call.1} parent=11 // pred_fallthru
          _
        // Predicated region
        $region21: #{tpu_custom_call.1} parent=11 // pred_check
          %p661 = pneg %p137
        $region22: #{tpu_custom_call.1} parent=11 // pred_check_branch
          %663 = sbr.rel (%p661) target = $region24
        $region23: #{tpu_custom_call.1} parent=11 // pred_region
          %s664 = smul.u32 2, %s56
          %s666 = ssub.s32 128, 128
          %667 = vsyncadd [#allocation7], %s666
          %s668 = smul.addr %s664, 64
          %s669 = scalar_lea.hbm %s2, %s668
          %s670 = sshll.u32 [#allocation6], 4
          %s671 = int_to_ptr.vmem [resolvable:$true] %s670
          %676 = dma.hbm_to_vmem [thread:$0]  %s669, 128, %s671, [#allocation7], 64, 64, 4
        $region24: #{tpu_custom_call.1} parent=11 // pred_fallthru
          _
        // Predicated region
        $region25: #{tpu_custom_call.1} parent=11 // pred_check
          %p677 = pneg %p163
        $region26: #{tpu_custom_call.1} parent=11 // pred_check_branch
          %679 = sbr.rel (%p677) target = $region28
        $region27: #{tpu_custom_call.1} parent=11 // pred_region
          %s680 = smul.u32 2, %s56
          %s682 = ssub.s32 128, 128
          %683 = vsyncadd [#allocation7], %s682
          %s684 = smul.addr %s680, 64
          %s685 = scalar_lea.hbm %s3, %s684
          %s686 = sshll.u32 [#allocation8], 4
          %s687 = int_to_ptr.vmem [resolvable:$true] %s686
          %692 = dma.hbm_to_vmem [thread:$0]  %s685, 128, %s687, [#allocation7], 64, 64, 4
        $region28: #{tpu_custom_call.1} parent=11 // pred_fallthru
          _
        // Predicated region
        $region29: #{tpu_custom_call.1} parent=11 // pred_check
          %p693 = pneg %p548
        $region30: #{tpu_custom_call.1} parent=11 // pred_check_branch
          %695 = sbr.rel (%p693) target = $region32
        $region31: #{tpu_custom_call.1} parent=11 // pred_region
          _
        $region32: #{tpu_custom_call.1} parent=11 // pred_fallthru
          _
        // Predicated region
        $region33: #{tpu_custom_call.1} parent=11 // pred_check
          %p696 = pneg %p569
        $region34: #{tpu_custom_call.1} parent=11 // pred_check_branch
          %698 = sbr.rel (%p696) target = $region36
        $region35: #{tpu_custom_call.1} parent=11 // pred_region
          _
        $region36: #{tpu_custom_call.1} parent=11 // pred_fallthru
          _
      $region12: #{tpu_custom_call.1} parent=5 // pred_fallthru
        _
      %p699 = scmp.lt.s32.totalorder %s47, 2
      // Predicated region
      $region37: #{tpu_custom_call.1} parent=5 // pred_check
        %p700 = pneg %p699
      $region38: #{tpu_custom_call.1} parent=5 // pred_check_branch
        %702 = sbr.rel (%p700) target = $region40
      $region39: #{tpu_custom_call.1} parent=5 // pred_region
        // Predicated region
        $region41: #{tpu_custom_call.1} parent=39 // pred_check
          %p703 = pneg %p183
        $region42: #{tpu_custom_call.1} parent=39 // pred_check_branch
          %705 = sbr.rel (%p703) target = $region44
        $region43: #{tpu_custom_call.1} parent=39 // pred_region
          %p706 = scmp.lt.s32.totalorder %s55, 1
          %s707 = scalar_select %p706, %s55, 1
          %s708 = scalar_lea.vmem %s4, %s707
        $region44: #{tpu_custom_call.1} parent=39 // pred_fallthru
          _
        // Predicated region
        $region45: #{tpu_custom_call.1} parent=39 // pred_check
          %p709 = pneg %p209
        $region46: #{tpu_custom_call.1} parent=39 // pred_check_branch
          %711 = sbr.rel (%p709) target = $region48
        $region47: #{tpu_custom_call.1} parent=39 // pred_region
          %s712 = sand.u32 %s47, 1
          %s713 = scalar_lea.sflag [#allocation10], %s712
          %s714 = sand.u32 %s199, 1
          %s715 = scalar_lea.vmem [#allocation9], %s714
          %s717 = ssub.s32 16, 16
          %718 = vsyncadd %s713, %s717
          %s719 = smul.addr %s55, 16
          %s720 = scalar_lea.hbm %s5, %s719
          %s722 = sshll.u32 %s715, 4
          %s723 = int_to_ptr.vmem [resolvable:$true] %s722
          %725 = dma.hbm_to_vmem [thread:$0]  %s720, 16, %s723, %s713
        $region48: #{tpu_custom_call.1} parent=39 // pred_fallthru
          _
        // Predicated region
        $region49: #{tpu_custom_call.1} parent=39 // pred_check
          %p726 = pneg %p235
        $region50: #{tpu_custom_call.1} parent=39 // pred_check_branch
          %728 = sbr.rel (%p726) target = $region52
        $region51: #{tpu_custom_call.1} parent=39 // pred_region
          %p729 = scmp.lt.s32.totalorder %s55, 1
          %s730 = scalar_select %p729, %s55, 1
          %s731 = smul.addr %s730, 4
          %s732 = smul.addr %s731, 4
          %s733 = scalar_lea.vmem %s6, %s732
        $region52: #{tpu_custom_call.1} parent=39 // pred_fallthru
          _
        // Predicated region
        $region53: #{tpu_custom_call.1} parent=39 // pred_check
          %p734 = pneg %p261
        $region54: #{tpu_custom_call.1} parent=39 // pred_check_branch
          %736 = sbr.rel (%p734) target = $region56
        $region55: #{tpu_custom_call.1} parent=39 // pred_region
          %s737 = sand.u32 %s47, 1
          %s738 = scalar_lea.sflag [#allocation10], %s737
          %s739 = sand.u32 %s251, 1
          %s740 = scalar_lea.vmem [#allocation11], %s739
          %s742 = ssub.s32 16, 16
          %743 = vsyncadd %s738, %s742
          %s744 = smul.addr %s55, 16
          %s745 = scalar_lea.hbm %s7, %s744
          %s747 = sshll.u32 %s740, 4
          %s748 = int_to_ptr.vmem [resolvable:$true] %s747
          %750 = dma.hbm_to_vmem [thread:$0]  %s745, 16, %s748, %s738
        $region56: #{tpu_custom_call.1} parent=39 // pred_fallthru
          _
        // Predicated region
        $region57: #{tpu_custom_call.1} parent=39 // pred_check
          %p751 = pneg %p287
        $region58: #{tpu_custom_call.1} parent=39 // pred_check_branch
          %753 = sbr.rel (%p751) target = $region60
        $region59: #{tpu_custom_call.1} parent=39 // pred_region
          %s754 = sand.u32 %s47, 1
          %s755 = scalar_lea.sflag [#allocation13], %s754
          %s756 = sand.u32 %s277, 1
          %s757 = smul.addr %s756, 16
          %s758 = scalar_lea.vmem [#allocation12], %s757
          %s760 = ssub.s32 256, 256
          %761 = vsyncadd %s755, %s760
          %s762 = smul.addr %s55, 4
          %s763 = smul.addr %s762, 64
          %s764 = scalar_lea.hbm %s8, %s763
          %s765 = sshll.u32 %s758, 4
          %s766 = int_to_ptr.vmem [resolvable:$true] %s765
          %771 = dma.hbm_to_vmem [thread:$0]  %s764, 256, %s766, %s755, 64, 64, 4
        $region60: #{tpu_custom_call.1} parent=39 // pred_fallthru
          _
        // Predicated region
        $region61: #{tpu_custom_call.1} parent=39 // pred_check
          %p772 = pneg %p313
        $region62: #{tpu_custom_call.1} parent=39 // pred_check_branch
          %774 = sbr.rel (%p772) target = $region64
        $region63: #{tpu_custom_call.1} parent=39 // pred_region
          %s775 = sand.u32 %s47, 1
          %s776 = scalar_lea.sflag [#allocation13], %s775
          %s777 = sand.u32 %s303, 1
          %s778 = scalar_lea.vmem [#allocation14], %s777
          %s780 = ssub.s32 16, 16
          %781 = vsyncadd %s776, %s780
          %s782 = smul.addr %s55, 16
          %s783 = scalar_lea.hbm %s9, %s782
          %s785 = sshll.u32 %s778, 4
          %s786 = int_to_ptr.vmem [resolvable:$true] %s785
          %788 = dma.hbm_to_vmem [thread:$0]  %s783, 16, %s786, %s776
        $region64: #{tpu_custom_call.1} parent=39 // pred_fallthru
          _
        // Predicated region
        $region65: #{tpu_custom_call.1} parent=39 // pred_check
          %p789 = pneg %p339
        $region66: #{tpu_custom_call.1} parent=39 // pred_check_branch
          %791 = sbr.rel (%p789) target = $region68
        $region67: #{tpu_custom_call.1} parent=39 // pred_region
          %s792 = sand.u32 %s47, 1
          %s793 = scalar_lea.sflag [#allocation16], %s792
          %s794 = sand.u32 %s329, 1
          %s795 = smul.addr %s794, 16
          %s796 = scalar_lea.vmem [#allocation15], %s795
          %s798 = ssub.s32 256, 256
          %799 = vsyncadd %s793, %s798
          %s800 = smul.addr %s55, 4
          %s801 = smul.addr %s800, 64
          %s802 = scalar_lea.hbm %s10, %s801
          %s803 = sshll.u32 %s796, 4
          %s804 = int_to_ptr.vmem [resolvable:$true] %s803
          %809 = dma.hbm_to_vmem [thread:$0]  %s802, 256, %s804, %s793, 64, 64, 4
        $region68: #{tpu_custom_call.1} parent=39 // pred_fallthru
          _
        // Predicated region
        $region69: #{tpu_custom_call.1} parent=39 // pred_check
          %p810 = pneg %p365
        $region70: #{tpu_custom_call.1} parent=39 // pred_check_branch
          %812 = sbr.rel (%p810) target = $region72
        $region71: #{tpu_custom_call.1} parent=39 // pred_region
          %s813 = sand.u32 %s47, 1
          %s814 = scalar_lea.sflag [#allocation16], %s813
          %s815 = sand.u32 %s355, 1
          %s816 = scalar_lea.vmem [#allocation17], %s815
          %s818 = ssub.s32 16, 16
          %819 = vsyncadd %s814, %s818
          %s820 = smul.addr %s55, 16
          %s821 = scalar_lea.hbm %s11, %s820
          %s823 = sshll.u32 %s816, 4
          %s824 = int_to_ptr.vmem [resolvable:$true] %s823
          %826 = dma.hbm_to_vmem [thread:$0]  %s821, 16, %s824, %s814
        $region72: #{tpu_custom_call.1} parent=39 // pred_fallthru
          _
        // Predicated region
        $region73: #{tpu_custom_call.1} parent=39 // pred_check
          %p827 = pneg %p391
        $region74: #{tpu_custom_call.1} parent=39 // pred_check_branch
          %829 = sbr.rel (%p827) target = $region76
        $region75: #{tpu_custom_call.1} parent=39 // pred_region
          %s830 = sand.u32 %s47, 1
          %s831 = scalar_lea.sflag [#allocation19], %s830
          %s832 = sand.u32 %s381, 1
          %s833 = scalar_lea.vmem [#allocation18], %s832
          %s835 = ssub.s32 16, 16
          %836 = vsyncadd %s831, %s835
          %s837 = smul.addr %s55, 16
          %s838 = scalar_lea.hbm %s12, %s837
          %s840 = sshll.u32 %s833, 4
          %s841 = int_to_ptr.vmem [resolvable:$true] %s840
          %843 = dma.hbm_to_vmem [thread:$0]  %s838, 16, %s841, %s831
        $region76: #{tpu_custom_call.1} parent=39 // pred_fallthru
          _
        // Predicated region
        $region77: #{tpu_custom_call.1} parent=39 // pred_check
          %p844 = pneg %p417
        $region78: #{tpu_custom_call.1} parent=39 // pred_check_branch
          %846 = sbr.rel (%p844) target = $region80
        $region79: #{tpu_custom_call.1} parent=39 // pred_region
          %s847 = sand.u32 %s47, 1
          %s848 = scalar_lea.sflag [#allocation19], %s847
          %s849 = sand.u32 %s407, 1
          %s850 = scalar_lea.vmem [#allocation20], %s849
          %s852 = ssub.s32 16, 16
          %853 = vsyncadd %s848, %s852
          %s854 = smul.addr %s55, 16
          %s855 = scalar_lea.hbm %s13, %s854
          %s857 = sshll.u32 %s850, 4
          %s858 = int_to_ptr.vmem [resolvable:$true] %s857
          %860 = dma.hbm_to_vmem [thread:$0]  %s855, 16, %s858, %s848
        $region80: #{tpu_custom_call.1} parent=39 // pred_fallthru
          _
        // Predicated region
        $region81: #{tpu_custom_call.1} parent=39 // pred_check
          %p861 = pneg %p443
        $region82: #{tpu_custom_call.1} parent=39 // pred_check_branch
          %863 = sbr.rel (%p861) target = $region84
        $region83: #{tpu_custom_call.1} parent=39 // pred_region
          %p864 = scmp.lt.s32.totalorder %s55, 1
          %s865 = scalar_select %p864, %s55, 1
          %s866 = smul.addr %s865, 4
          %s867 = smul.addr %s866, 4
          %s868 = scalar_lea.vmem %s14, %s867
        $region84: #{tpu_custom_call.1} parent=39 // pred_fallthru
          _
        // Predicated region
        $region85: #{tpu_custom_call.1} parent=39 // pred_check
          %p869 = pneg %p469
        $region86: #{tpu_custom_call.1} parent=39 // pred_check_branch
          %871 = sbr.rel (%p869) target = $region88
        $region87: #{tpu_custom_call.1} parent=39 // pred_region
          %p872 = scmp.lt.s32.totalorder %s55, 1
          %s873 = scalar_select %p872, %s55, 1
          %s874 = scalar_lea.vmem %s15, %s873
        $region88: #{tpu_custom_call.1} parent=39 // pred_fallthru
          _
        // Predicated region
        $region89: #{tpu_custom_call.1} parent=39 // pred_check
          %p875 = pneg %p495
        $region90: #{tpu_custom_call.1} parent=39 // pred_check_branch
          %877 = sbr.rel (%p875) target = $region92
        $region91: #{tpu_custom_call.1} parent=39 // pred_region
          %s878 = sand.u32 %s485, 1
          %s879 = scalar_lea.sflag [#allocation22], %s878
          %s880 = sand.u32 %s485, 1
          %s881 = smul.addr %s880, 16
          %s882 = scalar_lea.vmem [#allocation21], %s881
          %s884 = ssub.s32 256, 256
          %885 = vsyncadd %s879, %s884
          %s886 = smul.addr %s55, 4
          %s887 = smul.addr %s886, 64
          %s888 = scalar_lea.hbm %s16, %s887
          %s889 = sshll.u32 %s882, 4
          %s890 = int_to_ptr.vmem [resolvable:$true] %s889
          %895 = dma.hbm_to_vmem [thread:$0]  %s888, 256, %s890, %s879, 64, 64, 4
        $region92: #{tpu_custom_call.1} parent=39 // pred_fallthru
          _
        // Predicated region
        $region93: #{tpu_custom_call.1} parent=39 // pred_check
          %p896 = pneg %p521
        $region94: #{tpu_custom_call.1} parent=39 // pred_check_branch
          %898 = sbr.rel (%p896) target = $region96
        $region95: #{tpu_custom_call.1} parent=39 // pred_region
          %p899 = scmp.lt.s32.totalorder %s55, 1
          %s900 = scalar_select %p899, %s55, 1
          %s901 = scalar_lea.vmem %s17, %s900
        $region96: #{tpu_custom_call.1} parent=39 // pred_fallthru
          _
      $region40: #{tpu_custom_call.1} parent=5 // pred_fallthru
        _
      %p902 = scmp.le.s32.totalorder 1, %s47
      %p903 = scmp.lt.s32.totalorder %s47, 3
      %p904 = pnand %p902, %p903
      %p905 = pneg %p904
      // Predicated region
      $region97: #{tpu_custom_call.1} parent=5 // pred_check
        _
      $region98: #{tpu_custom_call.1} parent=5 // pred_check_branch
        %907 = sbr.rel (%p904) target = $region100
      $region99: #{tpu_custom_call.1} parent=5 // pred_region
        %s908 = ssub.s32 %s47, 1
        // Predicated region
        $region101: #{tpu_custom_call.1} parent=99 // pred_check
          %p909 = pneg %p85
        $region102: #{tpu_custom_call.1} parent=99 // pred_check_branch
          %911 = sbr.rel (%p909) target = $region104
        $region103: #{tpu_custom_call.1} parent=99 // pred_region
          %912 = dma.done [#allocation4], 256
        $region104: #{tpu_custom_call.1} parent=99 // pred_fallthru
          _
        // Predicated region
        $region105: #{tpu_custom_call.1} parent=99 // pred_check
          %p913 = pneg %p137
        $region106: #{tpu_custom_call.1} parent=99 // pred_check_branch
          %915 = sbr.rel (%p913) target = $region108
        $region107: #{tpu_custom_call.1} parent=99 // pred_region
          %916 = dma.done [#allocation7], 128
        $region108: #{tpu_custom_call.1} parent=99 // pred_fallthru
          _
        // Predicated region
        $region109: #{tpu_custom_call.1} parent=99 // pred_check
          %p917 = pneg %p163
        $region110: #{tpu_custom_call.1} parent=99 // pred_check_branch
          %919 = sbr.rel (%p917) target = $region112
        $region111: #{tpu_custom_call.1} parent=99 // pred_region
          %920 = dma.done [#allocation7], 128
        $region112: #{tpu_custom_call.1} parent=99 // pred_fallthru
          _
        %s921 = sand.u32 %s52, 1
        %s922 = scalar_lea.sflag [#allocation10], %s921
        %s923 = sand.u32 %s202, 1
        %s924 = scalar_lea.vmem [#allocation9], %s923
        // Predicated region
        $region113: #{tpu_custom_call.1} parent=99 // pred_check
          %p925 = pneg %p215
        $region114: #{tpu_custom_call.1} parent=99 // pred_check_branch
          %927 = sbr.rel (%p925) target = $region116
        $region115: #{tpu_custom_call.1} parent=99 // pred_region
          %928 = dma.done %s922, 16
        $region116: #{tpu_custom_call.1} parent=99 // pred_fallthru
          _
        %s929 = sand.u32 %s52, 1
        %s930 = scalar_lea.sflag [#allocation10], %s929
        %s931 = sand.u32 %s254, 1
        %s932 = scalar_lea.vmem [#allocation11], %s931
        // Predicated region
        $region117: #{tpu_custom_call.1} parent=99 // pred_check
          %p933 = pneg %p267
        $region118: #{tpu_custom_call.1} parent=99 // pred_check_branch
          %935 = sbr.rel (%p933) target = $region120
        $region119: #{tpu_custom_call.1} parent=99 // pred_region
          %936 = dma.done %s930, 16
        $region120: #{tpu_custom_call.1} parent=99 // pred_fallthru
          _
        %s937 = sand.u32 %s52, 1
        %s938 = scalar_lea.sflag [#allocation13], %s937
        %s939 = sand.u32 %s280, 1
        %s940 = smul.addr %s939, 16
        %s941 = scalar_lea.vmem [#allocation12], %s940
        // Predicated region
        $region121: #{tpu_custom_call.1} parent=99 // pred_check
          %p942 = pneg %p293
        $region122: #{tpu_custom_call.1} parent=99 // pred_check_branch
          %944 = sbr.rel (%p942) target = $region124
        $region123: #{tpu_custom_call.1} parent=99 // pred_region
          %945 = dma.done %s938, 256
        $region124: #{tpu_custom_call.1} parent=99 // pred_fallthru
          _
        %s946 = sand.u32 %s52, 1
        %s947 = scalar_lea.sflag [#allocation13], %s946
        %s948 = sand.u32 %s306, 1
        %s949 = scalar_lea.vmem [#allocation14], %s948
        // Predicated region
        $region125: #{tpu_custom_call.1} parent=99 // pred_check
          %p950 = pneg %p319
        $region126: #{tpu_custom_call.1} parent=99 // pred_check_branch
          %952 = sbr.rel (%p950) target = $region128
        $region127: #{tpu_custom_call.1} parent=99 // pred_region
          %953 = dma.done %s947, 16
        $region128: #{tpu_custom_call.1} parent=99 // pred_fallthru
          _
        %s954 = sand.u32 %s52, 1
        %s955 = scalar_lea.sflag [#allocation16], %s954
        %s956 = sand.u32 %s332, 1
        %s957 = smul.addr %s956, 16
        %s958 = scalar_lea.vmem [#allocation15], %s957
        // Predicated region
        $region129: #{tpu_custom_call.1} parent=99 // pred_check
          %p959 = pneg %p345
        $region130: #{tpu_custom_call.1} parent=99 // pred_check_branch
          %961 = sbr.rel (%p959) target = $region132
        $region131: #{tpu_custom_call.1} parent=99 // pred_region
          %962 = dma.done %s955, 256
        $region132: #{tpu_custom_call.1} parent=99 // pred_fallthru
          _
        %s963 = sand.u32 %s52, 1
        %s964 = scalar_lea.sflag [#allocation16], %s963
        %s965 = sand.u32 %s358, 1
        %s966 = scalar_lea.vmem [#allocation17], %s965
        // Predicated region
        $region133: #{tpu_custom_call.1} parent=99 // pred_check
          %p967 = pneg %p371
        $region134: #{tpu_custom_call.1} parent=99 // pred_check_branch
          %969 = sbr.rel (%p967) target = $region136
        $region135: #{tpu_custom_call.1} parent=99 // pred_region
          %970 = dma.done %s964, 16
        $region136: #{tpu_custom_call.1} parent=99 // pred_fallthru
          _
        %s971 = sand.u32 %s52, 1
        %s972 = scalar_lea.sflag [#allocation19], %s971
        %s973 = sand.u32 %s384, 1
        %s974 = scalar_lea.vmem [#allocation18], %s973
        // Predicated region
        $region137: #{tpu_custom_call.1} parent=99 // pred_check
          %p975 = pneg %p397
        $region138: #{tpu_custom_call.1} parent=99 // pred_check_branch
          %977 = sbr.rel (%p975) target = $region140
        $region139: #{tpu_custom_call.1} parent=99 // pred_region
          %978 = dma.done %s972, 16
        $region140: #{tpu_custom_call.1} parent=99 // pred_fallthru
          _
        %s979 = sand.u32 %s52, 1
        %s980 = scalar_lea.sflag [#allocation19], %s979
        %s981 = sand.u32 %s410, 1
        %s982 = scalar_lea.vmem [#allocation20], %s981
        // Predicated region
        $region141: #{tpu_custom_call.1} parent=99 // pred_check
          %p983 = pneg %p423
        $region142: #{tpu_custom_call.1} parent=99 // pred_check_branch
          %985 = sbr.rel (%p983) target = $region144
        $region143: #{tpu_custom_call.1} parent=99 // pred_region
          %986 = dma.done %s980, 16
        $region144: #{tpu_custom_call.1} parent=99 // pred_fallthru
          _
        %s987 = sand.u32 %s488, 1
        %s988 = scalar_lea.sflag [#allocation22], %s987
        %s989 = sand.u32 %s488, 1
        %s990 = smul.addr %s989, 16
        %s991 = scalar_lea.vmem [#allocation21], %s990
        // Predicated region
        $region145: #{tpu_custom_call.1} parent=99 // pred_check
          %p992 = pneg %p501
        $region146: #{tpu_custom_call.1} parent=99 // pred_check_branch
          %994 = sbr.rel (%p992) target = $region148
        $region147: #{tpu_custom_call.1} parent=99 // pred_region
          %995 = dma.done %s988, 256
        $region148: #{tpu_custom_call.1} parent=99 // pred_fallthru
          _
        %p996 = pneg %p85
        %p997 = pneg %p82
        %s998 = smul.u32 2, %s56
        %p999 = scmp.lt.s32.totalorder %s998, 1
        %s1000 = scalar_select %p999, %s998, 1
        %s1001 = smul.addr %s1000, 8
        %s1002 = scalar_lea.vmem %s1, %s1001
        %p1003 = pneg %p111
        %p1004 = pneg %p108
        %p1005 = pneg %p137
        %p1006 = pneg %p134
        %p1007 = pneg %p163
        %p1008 = pneg %p160
        %p1009 = scmp.lt.s32.totalorder %s57, 1
        %s1010 = scalar_select %p1009, %s57, 1
        %s1011 = scalar_lea.vmem %s4, %s1010
        %p1012 = pneg %p189
        %p1013 = pneg %p186
        %s1014 = sand.u32 %s52, 1
        %s1015 = scalar_lea.sflag [#allocation10], %s1014
        %s1016 = sand.u32 %s202, 1
        %s1017 = scalar_lea.vmem [#allocation9], %s1016
        %p1018 = pneg %p215
        %p1019 = pneg %p212
        %p1020 = scmp.lt.s32.totalorder %s57, 1
        %s1021 = scalar_select %p1020, %s57, 1
        %s1022 = smul.addr %s1021, 4
        %s1023 = smul.addr %s1022, 4
        %s1024 = scalar_lea.vmem %s6, %s1023
        %p1025 = pneg %p241
        %p1026 = pneg %p238
        %s1027 = sand.u32 %s52, 1
        %s1028 = scalar_lea.sflag [#allocation10], %s1027
        %s1029 = sand.u32 %s254, 1
        %s1030 = scalar_lea.vmem [#allocation11], %s1029
        %p1031 = pneg %p267
        %p1032 = pneg %p264
        %s1033 = sand.u32 %s52, 1
        %s1034 = scalar_lea.sflag [#allocation13], %s1033
        %s1035 = sand.u32 %s280, 1
        %s1036 = smul.addr %s1035, 16
        %s1037 = scalar_lea.vmem [#allocation12], %s1036
        %p1038 = pneg %p293
        %p1039 = pneg %p290
        %s1040 = sand.u32 %s52, 1
        %s1041 = scalar_lea.sflag [#allocation13], %s1040
        %s1042 = sand.u32 %s306, 1
        %s1043 = scalar_lea.vmem [#allocation14], %s1042
        %p1044 = pneg %p319
        %p1045 = pneg %p316
        %s1046 = sand.u32 %s52, 1
        %s1047 = scalar_lea.sflag [#allocation16], %s1046
        %s1048 = sand.u32 %s332, 1
        %s1049 = smul.addr %s1048, 16
        %s1050 = scalar_lea.vmem [#allocation15], %s1049
        %p1051 = pneg %p345
        %p1052 = pneg %p342
        %s1053 = sand.u32 %s52, 1
        %s1054 = scalar_lea.sflag [#allocation16], %s1053
        %s1055 = sand.u32 %s358, 1
        %s1056 = scalar_lea.vmem [#allocation17], %s1055
        %p1057 = pneg %p371
        %p1058 = pneg %p368
        %s1059 = sand.u32 %s52, 1
        %s1060 = scalar_lea.sflag [#allocation19], %s1059
        %s1061 = sand.u32 %s384, 1
        %s1062 = scalar_lea.vmem [#allocation18], %s1061
        %p1063 = pneg %p397
        %p1064 = pneg %p394
        %s1065 = sand.u32 %s52, 1
        %s1066 = scalar_lea.sflag [#allocation19], %s1065
        %s1067 = sand.u32 %s410, 1
        %s1068 = scalar_lea.vmem [#allocation20], %s1067
        %p1069 = pneg %p423
        %p1070 = pneg %p420
        %p1071 = scmp.lt.s32.totalorder %s57, 1
        %s1072 = scalar_select %p1071, %s57, 1
        %s1073 = smul.addr %s1072, 4
        %s1074 = smul.addr %s1073, 4
        %s1075 = scalar_lea.vmem %s14, %s1074
        %p1076 = pneg %p449
        %p1077 = pneg %p446
        %p1078 = scmp.lt.s32.totalorder %s57, 1
        %s1079 = scalar_select %p1078, %s57, 1
        %s1080 = scalar_lea.vmem %s15, %s1079
        %p1081 = pneg %p475
        %p1082 = pneg %p472
        %s1083 = sand.u32 %s488, 1
        %s1084 = scalar_lea.sflag [#allocation22], %s1083
        %s1085 = sand.u32 %s488, 1
        %s1086 = smul.addr %s1085, 16
        %s1087 = scalar_lea.vmem [#allocation21], %s1086
        %p1088 = pneg %p501
        %p1089 = pneg %p498
        %p1090 = scmp.lt.s32.totalorder %s57, 1
        %s1091 = scalar_select %p1090, %s57, 1
        %s1092 = scalar_lea.vmem %s17, %s1091
        %p1093 = pneg %p527
        %p1094 = pneg %p524
        %p1095 = pneg %p548
        %p1096 = pneg %p545
        %p1097 = pneg %p569
        %p1098 = pneg %p566
        %p1099 = pneg %p595
        %p1100 = pneg %p592
        %p1101 = pneg %p621
        %p1102 = pneg %p618
        %s1103 = smul.u32 2, %s56
        %s1104 = smul.u32 2, %s56
        %p1105 = scmp.lt.s32.totalorder %s1104, 1
        %s1106 = scalar_select %p1105, %s1104, 1
        %s1107 = smul.addr %s1106, 8
        %s1108 = scalar_lea.vmem %s1, %s1107
        %s1109 = smul.u32 2, %s56
        %s1110 = smul.u32 2, %s56
        %s1111 = smul.u32 2, %s56
        %p1112 = scmp.lt.s32.totalorder %s57, 1
        %s1113 = scalar_select %p1112, %s57, 1
        %s1114 = scalar_lea.vmem %s4, %s1113
        %p1115 = scmp.lt.s32.totalorder %s57, 1
        %s1116 = scalar_select %p1115, %s57, 1
        %s1117 = smul.addr %s1116, 4
        %s1118 = smul.addr %s1117, 4
        %s1119 = scalar_lea.vmem %s6, %s1118
        %p1120 = scmp.lt.s32.totalorder %s57, 1
        %s1121 = scalar_select %p1120, %s57, 1
        %s1122 = smul.addr %s1121, 4
        %s1123 = smul.addr %s1122, 4
        %s1124 = scalar_lea.vmem %s14, %s1123
        %p1125 = scmp.lt.s32.totalorder %s57, 1
        %s1126 = scalar_select %p1125, %s57, 1
        %s1127 = scalar_lea.vmem %s15, %s1126
        %p1128 = scmp.lt.s32.totalorder %s57, 1
        %s1129 = scalar_select %p1128, %s57, 1
        %s1130 = scalar_lea.vmem %s17, %s1129
        %p1132 = scmp.eq.s32.totalorder %s57, 0
        // Predicated region
        $region149: #{tpu_custom_call.1} parent=99 // pred_check
          %p1133 = pneg %p1132
        $region150: #{tpu_custom_call.1} parent=99 // pred_check_branch
          %1135 = sbr.rel (%p1133) target = $region152
        $region151: #{tpu_custom_call.1} parent=99 // pred_region
          %v1136 = vld [vmem:[#allocation3] sm:$0xff]
          %v1137 = vld [vmem:[#allocation3 + $0x8] sm:$0xff]
          %vm1138 = vcmask 261120
          %1139 = vst.msk [vmem:[#allocation2] sm:$0xff] %vm1138, %v1136
          %1140 = vst.msk [vmem:[#allocation2 + $0x8] sm:$0xff] %vm1138, %v1137
        $region152: #{tpu_custom_call.1} parent=99 // pred_fallthru
          _
        %v1141 = vld [vmem:[#allocation2] sm:$0xff]
        %v1142 = vld [vmem:[#allocation2 + $0x8] sm:$0xff]
        %v1143 = vld [vmem:[%s1108] sm:$0xff]
        %v1144 = vld [vmem:[%s1108 + $0x8] sm:$0xff]
        %v1145 = vlaneseq
        %v1146 = vshrl.u32 %v1145, 7
        %v1147 = vlaneseq
        %v1148 = vand.u32 %v1147, 127
        %vm1149 = vcmp.le.s32.totalorder %v1148, %v1146
        %v1150 = vsel %vm1149, 0.0, -1e+30
        %v1151 = vld [vmem:[%s1114] sm:$0x1]
        %v1152 = vld [vmem:[%s924] sm:$0x1]
        %vm1153 = vcmask 261120
        %v1154 = vsel %vm1153, %v1141, 0.0
        %1155 = vadd.xlane.f32.xlu0 %v1154
        %v1156 = vpop.xlane.xlu0 %1155
        %v1157 = vsel %vm1153, %v1142, 0.0
        %1158 = vadd.xlane.f32.xlu0 %v1157
        %v1159 = vpop.xlane.xlu0 %1158
        %v1160 = vrcp.pop 32.0
        %v1161 = vmul.f32 %v1156, %v1160
        %v1162 = vmul.f32 %v1159, %v1160
        %v1163 = vsub.f32 %v1141, %v1161
        %v1164 = vsub.f32 %v1142, %v1162
        %v1165 = vmul.f32 %v1163, %v1163
        %v1166 = vmul.f32 %v1164, %v1164
        %v1167 = vsel %vm1153, %v1165, 0.0
        %1168 = vadd.xlane.f32.xlu0 %v1167
        %v1169 = vpop.xlane.xlu0 %1168
        %v1170 = vsel %vm1153, %v1166, 0.0
        %1171 = vadd.xlane.f32.xlu0 %v1170
        %v1172 = vpop.xlane.xlu0 %1171
        %v1173 = vmul.f32 %v1169, %v1160
        %v1174 = vmul.f32 %v1172, %v1160
        %v1175 = vadd.f32 %v1173, 1e-07
        %v1176 = vadd.f32 %v1174, 1e-07
        %v1177 = vrsqrt.pop %v1175
        %v1178 = vrsqrt.pop %v1176
        %v1179 = vmul.f32 %v1163, %v1177
        %v1180 = vmul.f32 %v1164, %v1178
        %v1182 = vlaneseq
        %v1183 = vshrl.u32 %v1182, 7
        %v1184 = vsub.s32 0, %v1183
        %v1185 = vrot.slane %v1151, %v1184
        %v1187 = vmul.f32 %v1179, %v1185
        %v1188 = vmul.f32 %v1180, %v1185
        %v1190 = vlaneseq
        %v1191 = vshrl.u32 %v1190, 7
        %v1192 = vsub.s32 0, %v1191
        %v1193 = vrot.slane %v1152, %v1192
        %v1195 = vadd.f32 %v1187, %v1193
        %v1196 = vadd.f32 %v1188, %v1193
        %v1197 = vpack.c.bf16 %v1196, %v1195
        %v1198 = vld [vmem:[%s1119] sm:$0xf]
        %v1199 = vld [vmem:[%s1119 + $0x4] sm:$0xf]
        %v1200 = vld [vmem:[%s1119 + $0x8] sm:$0xf]
        %v1201 = vld [vmem:[%s1119 + $0xc] sm:$0xf]
        %v1202 = vld [vmem:[%s932] sm:$0x1]
        %v1204 = vlaneseq
        %v1205 = vshrl.u32 %v1204, 7
        %v1206 = vsub.s32 0, %v1205
        %v1207 = vrot.slane %v1202, %v1206
        %v1213 = vunpack.c.l.b16 %v1198
        %v1214 = vunpack.c.l.b16 %v1199
        %v1215 = vunpack.c.l.b16 %v1200
        %v1216 = vunpack.c.l.b16 %v1201
        %v1217 = vpack.c.b16 %v1214, %v1213
        %v1218 = vpack.c.b16 %v1216, %v1215
        %v1222 = vsel %vm1153, %v1197, 0
        %1224 = vmatprep.subr.bf16.mxu0 0
        %1225 = vmatpush1.bf16.msra.mxu0 %v1217
        %1226 = vmatprep.subr.bf16.mxu0 0
        %1227 = vmatpush1.bf16.msra.mxu0 %v1218
        %1228 = vmatprep.subr.bf16.mxu0 0
        %1229 = vmatpush1.bf16.msra.mxu0 0
        %1230 = vmatprep.subr.bf16.mxu0 0
        %1231 = vmatpush1.bf16.msra.mxu0 0
        %1232 = vmatprep.subr.bf16.mxu0 0
        %1233 = vmatpush1.bf16.msra.mxu0 0
        %1234 = vmatprep.subr.bf16.mxu0 0
        %1235 = vmatpush1.bf16.msra.mxu0 0
        %1236 = vmatprep.subr.bf16.mxu0 0
        %1237 = vmatpush1.bf16.msra.mxu0 0
        %1238 = vmatprep.subr.bf16.mxu0 0
        %1239 = vmatpush1.bf16.msra.mxu0 0
        %1240 = vmatprep.subr.bf16.mxu0 0
        %1241 = vmatpush1.bf16.msra.mxu0 0
        %1242 = vmatprep.subr.bf16.mxu0 0
        %1243 = vmatpush1.bf16.msra.mxu0 0
        %1244 = vmatprep.subr.bf16.mxu0 0
        %1245 = vmatpush1.bf16.msra.mxu0 0
        %1246 = vmatprep.subr.bf16.mxu0 0
        %1247 = vmatpush1.bf16.msra.mxu0 0
        %1248 = vmatprep.subr.bf16.mxu0 0
        %1249 = vmatpush1.bf16.msra.mxu0 0
        %1250 = vmatprep.subr.bf16.mxu0 0
        %1251 = vmatpush1.bf16.msra.mxu0 0
        %1252 = vmatprep.subr.bf16.mxu0 0
        %1253 = vmatpush1.bf16.msra.mxu0 0
        %1254 = vmatprep.subr.bf16.mxu0 0
        %1255 = vmatpush1.bf16.msra.mxu0 0
        %1256 = vmatprep.mubr.bf16.mxu0 0
        %1257 = vmatmul.mubr.bf16.gmra.mrb[0].mxu0 %v1222
        %v1258 = vpop.f32.mrb[0].mxu0
        %v1259 = vadd.f32 %v1207, %v1258
        %v1260 = vpop.f32.mrb[0].mxu0
        %v1261 = vpop.f32.mrb[0].mxu0
        %v1262 = vadd.f32 %v1207, %v1261
        %v1263 = vpop.f32.mrb[0].mxu0
        %1264 = vdwg.mxu0
        %v1265 = vmul.f32 %v1259, 0.25
        %v1266 = vmul.f32 %v1262, 0.25
        %v1267 = vpack.c.bf16 %v1266, %v1265
        %v1269 = vunpack.c.l.b16 %v1267
        %v1270 = vunpack.c.h.b16 %v1267
        %v1271 = vpack.c.b16 %v1269, %v1269
        %v1272 = vpack.c.b16 %v1270, %v1270
        %v1273 = vpack.c.bf16 %v1142, %v1141
        %v1274 = vld [vmem:[%s941] sm:$0xf]
        %v1275 = vld [vmem:[%s941 + $0x4] sm:$0xf]
        %v1276 = vld [vmem:[%s941 + $0x8] sm:$0xf]
        %v1277 = vld [vmem:[%s941 + $0xc] sm:$0xf]
        %v1278 = vld [vmem:[%s949] sm:$0x1]
        %v1280 = vlaneseq
        %v1281 = vshrl.u32 %v1280, 7
        %v1282 = vsub.s32 0, %v1281
        %v1283 = vrot.slane %v1278, %v1282
        %v1289 = vunpack.c.l.b16 %v1274
        %v1290 = vunpack.c.l.b16 %v1275
        %v1291 = vunpack.c.l.b16 %v1276
        %v1292 = vunpack.c.l.b16 %v1277
        %v1293 = vpack.c.b16 %v1290, %v1289
        %v1294 = vpack.c.b16 %v1292, %v1291
        %v1298 = vsel %vm1153, %v1273, 0
        %1300 = vmatprep.subr.bf16.mxu0 0
        %1301 = vmatpush1.bf16.msra.mxu0 %v1293
        %1302 = vmatprep.subr.bf16.mxu0 0
        %1303 = vmatpush1.bf16.msra.mxu0 %v1294
        %1304 = vmatprep.subr.bf16.mxu0 0
        %1305 = vmatpush1.bf16.msra.mxu0 0
        %1306 = vmatprep.subr.bf16.mxu0 0
        %1307 = vmatpush1.bf16.msra.mxu0 0
        %1308 = vmatprep.subr.bf16.mxu0 0
        %1309 = vmatpush1.bf16.msra.mxu0 0
        %1310 = vmatprep.subr.bf16.mxu0 0
        %1311 = vmatpush1.bf16.msra.mxu0 0
        %1312 = vmatprep.subr.bf16.mxu0 0
        %1313 = vmatpush1.bf16.msra.mxu0 0
        %1314 = vmatprep.subr.bf16.mxu0 0
        %1315 = vmatpush1.bf16.msra.mxu0 0
        %1316 = vmatprep.subr.bf16.mxu0 0
        %1317 = vmatpush1.bf16.msra.mxu0 0
        %1318 = vmatprep.subr.bf16.mxu0 0
        %1319 = vmatpush1.bf16.msra.mxu0 0
        %1320 = vmatprep.subr.bf16.mxu0 0
        %1321 = vmatpush1.bf16.msra.mxu0 0
        %1322 = vmatprep.subr.bf16.mxu0 0
        %1323 = vmatpush1.bf16.msra.mxu0 0
        %1324 = vmatprep.subr.bf16.mxu0 0
        %1325 = vmatpush1.bf16.msra.mxu0 0
        %1326 = vmatprep.subr.bf16.mxu0 0
        %1327 = vmatpush1.bf16.msra.mxu0 0
        %1328 = vmatprep.subr.bf16.mxu0 0
        %1329 = vmatpush1.bf16.msra.mxu0 0
        %1330 = vmatprep.subr.bf16.mxu0 0
        %1331 = vmatpush1.bf16.msra.mxu0 0
        %1332 = vmatprep.mubr.bf16.mxu0 0
        %1333 = vmatmul.mubr.bf16.gmra.mrb[0].mxu0 %v1298
        %v1334 = vpop.f32.mrb[0].mxu0
        %v1335 = vadd.f32 %v1283, %v1334
        %v1336 = vpop.f32.mrb[0].mxu0
        %v1337 = vpop.f32.mrb[0].mxu0
        %v1338 = vadd.f32 %v1283, %v1337
        %v1339 = vpop.f32.mrb[0].mxu0
        %1340 = vdwg.mxu0
        %v1341 = vpack.c.bf16 %v1338, %v1335
        %v1343 = vunpack.c.l.b16 %v1341
        %v1344 = vunpack.c.h.b16 %v1341
        %v1345 = vpack.c.b16 %v1343, %v1343
        %v1346 = vpack.c.b16 %v1344, %v1344
        %vm1347 = vcmask 130048
        %v1349 = vsel %vm1347, %v1271, 0
        %v1352 = vsel %vm1347, %v1345, 0
        %1354 = vmatprep.subr.bf16.mxu0 0
        %1355 = vmatpush1.bf16.xpose.msra.mxu0 %v1352
        %1356 = vmatprep.subr.bf16.mxu0 0
        %1357 = vmatpush1.bf16.xpose.msra.mxu0 0
        %1358 = vmatprep.subr.bf16.mxu0 0
        %1359 = vmatpush1.bf16.xpose.msra.mxu0 0
        %1360 = vmatprep.subr.bf16.mxu0 0
        %1361 = vmatpush1.bf16.xpose.msra.mxu0 0
        %1362 = vmatprep.subr.bf16.mxu0 0
        %1363 = vmatpush1.bf16.xpose.msra.mxu0 0
        %1364 = vmatprep.subr.bf16.mxu0 0
        %1365 = vmatpush1.bf16.xpose.msra.mxu0 0
        %1366 = vmatprep.subr.bf16.mxu0 0
        %1367 = vmatpush1.bf16.xpose.msra.mxu0 0
        %1368 = vmatprep.subr.bf16.mxu0 0
        %1369 = vmatpush1.bf16.xpose.msra.mxu0 0
        %1370 = vmatprep.subr.bf16.mxu0 0
        %1371 = vmatpush1.bf16.xpose.msra.mxu0 0
        %1372 = vmatprep.subr.bf16.mxu0 0
        %1373 = vmatpush1.bf16.xpose.msra.mxu0 0
        %1374 = vmatprep.subr.bf16.mxu0 0
        %1375 = vmatpush1.bf16.xpose.msra.mxu0 0
        %1376 = vmatprep.subr.bf16.mxu0 0
        %1377 = vmatpush1.bf16.xpose.msra.mxu0 0
        %1378 = vmatprep.subr.bf16.mxu0 0
        %1379 = vmatpush1.bf16.xpose.msra.mxu0 0
        %1380 = vmatprep.subr.bf16.mxu0 0
        %1381 = vmatpush1.bf16.xpose.msra.mxu0 0
        %1382 = vmatprep.subr.bf16.mxu0 0
        %1383 = vmatpush1.bf16.xpose.msra.mxu0 0
        %1384 = vmatprep.subr.bf16.mxu0 0
        %1385 = vmatpush1.bf16.xpose.msra.mxu0 0
        %1386 = vmatprep.mubr.bf16.mxu0 0
        %1387 = vmatmul.mubr.bf16.gmra.mrb[0].mxu0 %v1349
        %v1388 = vpop.f32.mrb[0].mxu0
        %v1389 = vadd.f32 %v1150, %v1388
        %v1390 = vpop.f32.mrb[0].mxu0
        %v1391 = vpop.f32.mrb[0].mxu0
        %v1392 = vpop.f32.mrb[0].mxu0
        %1393 = vdwg.mxu0
        %v1395 = vsel %vm1347, %v1272, 0
        %v1398 = vsel %vm1347, %v1346, 0
        %1400 = vmatprep.subr.bf16.mxu0 0
        %1401 = vmatpush1.bf16.xpose.msra.mxu0 %v1398
        %1402 = vmatprep.subr.bf16.mxu0 0
        %1403 = vmatpush1.bf16.xpose.msra.mxu0 0
        %1404 = vmatprep.subr.bf16.mxu0 0
        %1405 = vmatpush1.bf16.xpose.msra.mxu0 0
        %1406 = vmatprep.subr.bf16.mxu0 0
        %1407 = vmatpush1.bf16.xpose.msra.mxu0 0
        %1408 = vmatprep.subr.bf16.mxu0 0
        %1409 = vmatpush1.bf16.xpose.msra.mxu0 0
        %1410 = vmatprep.subr.bf16.mxu0 0
        %1411 = vmatpush1.bf16.xpose.msra.mxu0 0
        %1412 = vmatprep.subr.bf16.mxu0 0
        %1413 = vmatpush1.bf16.xpose.msra.mxu0 0
        %1414 = vmatprep.subr.bf16.mxu0 0
        %1415 = vmatpush1.bf16.xpose.msra.mxu0 0
        %1416 = vmatprep.subr.bf16.mxu0 0
        %1417 = vmatpush1.bf16.xpose.msra.mxu0 0
        %1418 = vmatprep.subr.bf16.mxu0 0
        %1419 = vmatpush1.bf16.xpose.msra.mxu0 0
        %1420 = vmatprep.subr.bf16.mxu0 0
        %1421 = vmatpush1.bf16.xpose.msra.mxu0 0
        %1422 = vmatprep.subr.bf16.mxu0 0
        %1423 = vmatpush1.bf16.xpose.msra.mxu0 0
        %1424 = vmatprep.subr.bf16.mxu0 0
        %1425 = vmatpush1.bf16.xpose.msra.mxu0 0
        %1426 = vmatprep.subr.bf16.mxu0 0
        %1427 = vmatpush1.bf16.xpose.msra.mxu0 0
        %1428 = vmatprep.subr.bf16.mxu0 0
        %1429 = vmatpush1.bf16.xpose.msra.mxu0 0
        %1430 = vmatprep.subr.bf16.mxu0 0
        %1431 = vmatpush1.bf16.xpose.msra.mxu0 0
        %1432 = vmatprep.mubr.bf16.mxu0 0
        %1433 = vmatmul.mubr.bf16.gmra.mrb[0].mxu0 %v1395
        %v1434 = vpop.f32.mrb[0].mxu0
        %v1435 = vadd.f32 %v1150, %v1434
        %v1436 = vpop.f32.mrb[0].mxu0
        %v1437 = vpop.f32.mrb[0].mxu0
        %v1438 = vpop.f32.mrb[0].mxu0
        %1439 = vdwg.mxu0
        %vm1440 = vcmask 64512
        %v1441 = vsel %vm1440, %v1389, -inf
        %1442 = vmax.xlane.f32.xlu0 %v1441
        %v1443 = vpop.xlane.xlu0 %1442
        %v1444 = vsel %vm1440, %v1435, -inf
        %1445 = vmax.xlane.f32.xlu0 %v1444
        %v1446 = vpop.xlane.xlu0 %1445
        %v1447 = vsub.f32 %v1389, %v1443
        %v1448 = vsub.f32 %v1435, %v1446
        %v1449 = vmul.f32 %v1447, 1.442695
        %v1450 = vpow.pop %v1449
        %v1451 = vmul.f32 %v1448, 1.442695
        %v1452 = vpow.pop %v1451
        %v1453 = vsel %vm1440, %v1450, 0.0
        %1454 = vadd.xlane.f32.xlu0 %v1453
        %v1455 = vpop.xlane.xlu0 %1454
        %v1456 = vsel %vm1440, %v1452, 0.0
        %1457 = vadd.xlane.f32.xlu0 %v1456
        %v1458 = vpop.xlane.xlu0 %1457
        %v1459 = vpack.c.bf16 %v1450, %v1450
        %v1460 = vpack.c.bf16 %v1452, %v1452
        %1461 = vrot.lane.b32.xlu0 %v1345, 96
        %v1462 = vpop.permute.xlu0 %1461
        %v1464 = vsel %vm1440, %v1459, 0
        %vm1466 = vcmask 1043456
        %v1468 = vsel %vm1466, %v1462, 0
        %1470 = vmatprep.subr.bf16.mxu0 0
        %1471 = vmatpush1.bf16.msra.mxu0 %v1468
        %1472 = vmatprep.subr.bf16.mxu0 0
        %1473 = vmatpush1.bf16.msra.mxu0 0
        %1474 = vmatprep.subr.bf16.mxu0 0
        %1475 = vmatpush1.bf16.msra.mxu0 0
        %1476 = vmatprep.subr.bf16.mxu0 0
        %1477 = vmatpush1.bf16.msra.mxu0 0
        %1478 = vmatprep.subr.bf16.mxu0 0
        %1479 = vmatpush1.bf16.msra.mxu0 0
        %1480 = vmatprep.subr.bf16.mxu0 0
        %1481 = vmatpush1.bf16.msra.mxu0 0
        %1482 = vmatprep.subr.bf16.mxu0 0
        %1483 = vmatpush1.bf16.msra.mxu0 0
        %1484 = vmatprep.subr.bf16.mxu0 0
        %1485 = vmatpush1.bf16.msra.mxu0 0
        %1486 = vmatprep.subr.bf16.mxu0 0
        %1487 = vmatpush1.bf16.msra.mxu0 0
        %1488 = vmatprep.subr.bf16.mxu0 0
        %1489 = vmatpush1.bf16.msra.mxu0 0
        %1490 = vmatprep.subr.bf16.mxu0 0
        %1491 = vmatpush1.bf16.msra.mxu0 0
        %1492 = vmatprep.subr.bf16.mxu0 0
        %1493 = vmatpush1.bf16.msra.mxu0 0
        %1494 = vmatprep.subr.bf16.mxu0 0
        %1495 = vmatpush1.bf16.msra.mxu0 0
        %1496 = vmatprep.subr.bf16.mxu0 0
        %1497 = vmatpush1.bf16.msra.mxu0 0
        %1498 = vmatprep.subr.bf16.mxu0 0
        %1499 = vmatpush1.bf16.msra.mxu0 0
        %1500 = vmatprep.subr.bf16.mxu0 0
        %1501 = vmatpush1.bf16.msra.mxu0 0
        %1502 = vmatprep.mubr.bf16.mxu0 0
        %1503 = vmatmul.mubr.bf16.gmra.mrb[0].mxu0 %v1464
        %v1504 = vpop.f32.mrb[0].mxu0
        %v1505 = vadd.f32 0.0, %v1504
        %v1506 = vpop.f32.mrb[0].mxu0
        %v1507 = vpop.f32.mrb[0].mxu0
        %v1508 = vpop.f32.mrb[0].mxu0
        %1509 = vdwg.mxu0
        %1510 = vrot.lane.b32.xlu0 %v1346, 96
        %v1511 = vpop.permute.xlu0 %1510
        %v1513 = vsel %vm1440, %v1460, 0
        %v1516 = vsel %vm1466, %v1511, 0
        %1518 = vmatprep.subr.bf16.mxu0 0
        %1519 = vmatpush1.bf16.msra.mxu0 %v1516
        %1520 = vmatprep.subr.bf16.mxu0 0
        %1521 = vmatpush1.bf16.msra.mxu0 0
        %1522 = vmatprep.subr.bf16.mxu0 0
        %1523 = vmatpush1.bf16.msra.mxu0 0
        %1524 = vmatprep.subr.bf16.mxu0 0
        %1525 = vmatpush1.bf16.msra.mxu0 0
        %1526 = vmatprep.subr.bf16.mxu0 0
        %1527 = vmatpush1.bf16.msra.mxu0 0
        %1528 = vmatprep.subr.bf16.mxu0 0
        %1529 = vmatpush1.bf16.msra.mxu0 0
        %1530 = vmatprep.subr.bf16.mxu0 0
        %1531 = vmatpush1.bf16.msra.mxu0 0
        %1532 = vmatprep.subr.bf16.mxu0 0
        %1533 = vmatpush1.bf16.msra.mxu0 0
        %1534 = vmatprep.subr.bf16.mxu0 0
        %1535 = vmatpush1.bf16.msra.mxu0 0
        %1536 = vmatprep.subr.bf16.mxu0 0
        %1537 = vmatpush1.bf16.msra.mxu0 0
        %1538 = vmatprep.subr.bf16.mxu0 0
        %1539 = vmatpush1.bf16.msra.mxu0 0
        %1540 = vmatprep.subr.bf16.mxu0 0
        %1541 = vmatpush1.bf16.msra.mxu0 0
        %1542 = vmatprep.subr.bf16.mxu0 0
        %1543 = vmatpush1.bf16.msra.mxu0 0
        %1544 = vmatprep.subr.bf16.mxu0 0
        %1545 = vmatpush1.bf16.msra.mxu0 0
        %1546 = vmatprep.subr.bf16.mxu0 0
        %1547 = vmatpush1.bf16.msra.mxu0 0
        %1548 = vmatprep.subr.bf16.mxu0 0
        %1549 = vmatpush1.bf16.msra.mxu0 0
        %1550 = vmatprep.mubr.bf16.mxu0 0
        %1551 = vmatmul.mubr.bf16.gmra.mrb[0].mxu0 %v1513
        %v1552 = vpop.f32.mrb[0].mxu0
        %v1553 = vadd.f32 0.0, %v1552
        %v1554 = vpop.f32.mrb[0].mxu0
        %v1555 = vpop.f32.mrb[0].mxu0
        %v1556 = vpop.f32.mrb[0].mxu0
        %1557 = vdwg.mxu0
        %v1558 = vrcp.pop %v1455
        %v1559 = vrcp.pop %v1458
        %v1560 = vmul.f32 %v1505, %v1558
        %v1561 = vmul.f32 %v1553, %v1559
        %1562 = vrot.lane.b32.xlu0 %v1271, 112
        %v1563 = vpop.permute.xlu0 %1562
        %1564 = vrot.lane.b32.xlu0 %v1345, 112
        %v1565 = vpop.permute.xlu0 %1564
        %v1567 = vsel %vm1347, %v1563, 0
        %v1570 = vsel %vm1347, %v1565, 0
        %1572 = vmatprep.subr.bf16.mxu0 0
        %1573 = vmatpush1.bf16.xpose.msra.mxu0 %v1570
        %1574 = vmatprep.subr.bf16.mxu0 0
        %1575 = vmatpush1.bf16.xpose.msra.mxu0 0
        %1576 = vmatprep.subr.bf16.mxu0 0
        %1577 = vmatpush1.bf16.xpose.msra.mxu0 0
        %1578 = vmatprep.subr.bf16.mxu0 0
        %1579 = vmatpush1.bf16.xpose.msra.mxu0 0
        %1580 = vmatprep.subr.bf16.mxu0 0
        %1581 = vmatpush1.bf16.xpose.msra.mxu0 0
        %1582 = vmatprep.subr.bf16.mxu0 0
        %1583 = vmatpush1.bf16.xpose.msra.mxu0 0
        %1584 = vmatprep.subr.bf16.mxu0 0
        %1585 = vmatpush1.bf16.xpose.msra.mxu0 0
        %1586 = vmatprep.subr.bf16.mxu0 0
        %1587 = vmatpush1.bf16.xpose.msra.mxu0 0
        %1588 = vmatprep.subr.bf16.mxu0 0
        %1589 = vmatpush1.bf16.xpose.msra.mxu0 0
        %1590 = vmatprep.subr.bf16.mxu0 0
        %1591 = vmatpush1.bf16.xpose.msra.mxu0 0
        %1592 = vmatprep.subr.bf16.mxu0 0
        %1593 = vmatpush1.bf16.xpose.msra.mxu0 0
        %1594 = vmatprep.subr.bf16.mxu0 0
        %1595 = vmatpush1.bf16.xpose.msra.mxu0 0
        %1596 = vmatprep.subr.bf16.mxu0 0
        %1597 = vmatpush1.bf16.xpose.msra.mxu0 0
        %1598 = vmatprep.subr.bf16.mxu0 0
        %1599 = vmatpush1.bf16.xpose.msra.mxu0 0
        %1600 = vmatprep.subr.bf16.mxu0 0
        %1601 = vmatpush1.bf16.xpose.msra.mxu0 0
        %1602 = vmatprep.subr.bf16.mxu0 0
        %1603 = vmatpush1.bf16.xpose.msra.mxu0 0
        %1604 = vmatprep.mubr.bf16.mxu0 0
        %1605 = vmatmul.mubr.bf16.gmra.mrb[0].mxu0 %v1567
        %v1606 = vpop.f32.mrb[0].mxu0
        %v1607 = vadd.f32 %v1150, %v1606
        %v1608 = vpop.f32.mrb[0].mxu0
        %v1609 = vpop.f32.mrb[0].mxu0
        %v1610 = vpop.f32.mrb[0].mxu0
        %1611 = vdwg.mxu0
        %1612 = vrot.lane.b32.xlu0 %v1272, 112
        %v1613 = vpop.permute.xlu0 %1612
        %1614 = vrot.lane.b32.xlu0 %v1346, 112
        %v1615 = vpop.permute.xlu0 %1614
        %v1617 = vsel %vm1347, %v1613, 0
        %v1620 = vsel %vm1347, %v1615, 0
        %1622 = vmatprep.subr.bf16.mxu0 0
        %1623 = vmatpush1.bf16.xpose.msra.mxu0 %v1620
        %1624 = vmatprep.subr.bf16.mxu0 0
        %1625 = vmatpush1.bf16.xpose.msra.mxu0 0
        %1626 = vmatprep.subr.bf16.mxu0 0
        %1627 = vmatpush1.bf16.xpose.msra.mxu0 0
        %1628 = vmatprep.subr.bf16.mxu0 0
        %1629 = vmatpush1.bf16.xpose.msra.mxu0 0
        %1630 = vmatprep.subr.bf16.mxu0 0
        %1631 = vmatpush1.bf16.xpose.msra.mxu0 0
        %1632 = vmatprep.subr.bf16.mxu0 0
        %1633 = vmatpush1.bf16.xpose.msra.mxu0 0
        %1634 = vmatprep.subr.bf16.mxu0 0
        %1635 = vmatpush1.bf16.xpose.msra.mxu0 0
        %1636 = vmatprep.subr.bf16.mxu0 0
        %1637 = vmatpush1.bf16.xpose.msra.mxu0 0
        %1638 = vmatprep.subr.bf16.mxu0 0
        %1639 = vmatpush1.bf16.xpose.msra.mxu0 0
        %1640 = vmatprep.subr.bf16.mxu0 0
        %1641 = vmatpush1.bf16.xpose.msra.mxu0 0
        %1642 = vmatprep.subr.bf16.mxu0 0
        %1643 = vmatpush1.bf16.xpose.msra.mxu0 0
        %1644 = vmatprep.subr.bf16.mxu0 0
        %1645 = vmatpush1.bf16.xpose.msra.mxu0 0
        %1646 = vmatprep.subr.bf16.mxu0 0
        %1647 = vmatpush1.bf16.xpose.msra.mxu0 0
        %1648 = vmatprep.subr.bf16.mxu0 0
        %1649 = vmatpush1.bf16.xpose.msra.mxu0 0
        %1650 = vmatprep.subr.bf16.mxu0 0
        %1651 = vmatpush1.bf16.xpose.msra.mxu0 0
        %1652 = vmatprep.subr.bf16.mxu0 0
        %1653 = vmatpush1.bf16.xpose.msra.mxu0 0
        %1654 = vmatprep.mubr.bf16.mxu0 0
        %1655 = vmatmul.mubr.bf16.gmra.mrb[0].mxu0 %v1617
        %v1656 = vpop.f32.mrb[0].mxu0
        %v1657 = vadd.f32 %v1150, %v1656
        %v1658 = vpop.f32.mrb[0].mxu0
        %v1659 = vpop.f32.mrb[0].mxu0
        %v1660 = vpop.f32.mrb[0].mxu0
        %1661 = vdwg.mxu0
        %v1662 = vsel %vm1440, %v1607, -inf
        %1663 = vmax.xlane.f32.xlu0 %v1662
        %v1664 = vpop.xlane.xlu0 %1663
        %v1665 = vsel %vm1440, %v1657, -inf
        %1666 = vmax.xlane.f32.xlu0 %v1665
        %v1667 = vpop.xlane.xlu0 %1666
        %v1668 = vsub.f32 %v1607, %v1664
        %v1669 = vsub.f32 %v1657, %v1667
        %v1670 = vmul.f32 %v1668, 1.442695
        %v1671 = vpow.pop %v1670
        %v1672 = vmul.f32 %v1669, 1.442695
        %v1673 = vpow.pop %v1672
        %v1674 = vsel %vm1440, %v1671, 0.0
        %1675 = vadd.xlane.f32.xlu0 %v1674
        %v1676 = vpop.xlane.xlu0 %1675
        %v1677 = vsel %vm1440, %v1673, 0.0
        %1678 = vadd.xlane.f32.xlu0 %v1677
        %v1679 = vpop.xlane.xlu0 %1678
        %v1680 = vpack.c.bf16 %v1671, %v1671
        %v1681 = vpack.c.bf16 %v1673, %v1673
        %1682 = vrot.lane.b32.xlu0 %v1345, 80
        %v1683 = vpop.permute.xlu0 %1682
        %v1685 = vsel %vm1440, %v1680, 0
        %v1688 = vsel %vm1466, %v1683, 0
        %1690 = vmatprep.subr.bf16.mxu0 0
        %1691 = vmatpush1.bf16.msra.mxu0 %v1688
        %1692 = vmatprep.subr.bf16.mxu0 0
        %1693 = vmatpush1.bf16.msra.mxu0 0
        %1694 = vmatprep.subr.bf16.mxu0 0
        %1695 = vmatpush1.bf16.msra.mxu0 0
        %1696 = vmatprep.subr.bf16.mxu0 0
        %1697 = vmatpush1.bf16.msra.mxu0 0
        %1698 = vmatprep.subr.bf16.mxu0 0
        %1699 = vmatpush1.bf16.msra.mxu0 0
        %1700 = vmatprep.subr.bf16.mxu0 0
        %1701 = vmatpush1.bf16.msra.mxu0 0
        %1702 = vmatprep.subr.bf16.mxu0 0
        %1703 = vmatpush1.bf16.msra.mxu0 0
        %1704 = vmatprep.subr.bf16.mxu0 0
        %1705 = vmatpush1.bf16.msra.mxu0 0
        %1706 = vmatprep.subr.bf16.mxu0 0
        %1707 = vmatpush1.bf16.msra.mxu0 0
        %1708 = vmatprep.subr.bf16.mxu0 0
        %1709 = vmatpush1.bf16.msra.mxu0 0
        %1710 = vmatprep.subr.bf16.mxu0 0
        %1711 = vmatpush1.bf16.msra.mxu0 0
        %1712 = vmatprep.subr.bf16.mxu0 0
        %1713 = vmatpush1.bf16.msra.mxu0 0
        %1714 = vmatprep.subr.bf16.mxu0 0
        %1715 = vmatpush1.bf16.msra.mxu0 0
        %1716 = vmatprep.subr.bf16.mxu0 0
        %1717 = vmatpush1.bf16.msra.mxu0 0
        %1718 = vmatprep.subr.bf16.mxu0 0
        %1719 = vmatpush1.bf16.msra.mxu0 0
        %1720 = vmatprep.subr.bf16.mxu0 0
        %1721 = vmatpush1.bf16.msra.mxu0 0
        %1722 = vmatprep.mubr.bf16.mxu0 0
        %1723 = vmatmul.mubr.bf16.gmra.mrb[0].mxu0 %v1685
        %v1724 = vpop.f32.mrb[0].mxu0
        %v1725 = vadd.f32 0.0, %v1724
        %v1726 = vpop.f32.mrb[0].mxu0
        %v1727 = vpop.f32.mrb[0].mxu0
        %v1728 = vpop.f32.mrb[0].mxu0
        %1729 = vdwg.mxu0
        %1730 = vrot.lane.b32.xlu0 %v1346, 80
        %v1731 = vpop.permute.xlu0 %1730
        %v1733 = vsel %vm1440, %v1681, 0
        %v1736 = vsel %vm1466, %v1731, 0
        %1738 = vmatprep.subr.bf16.mxu0 0
        %1739 = vmatpush1.bf16.msra.mxu0 %v1736
        %1740 = vmatprep.subr.bf16.mxu0 0
        %1741 = vmatpush1.bf16.msra.mxu0 0
        %1742 = vmatprep.subr.bf16.mxu0 0
        %1743 = vmatpush1.bf16.msra.mxu0 0
        %1744 = vmatprep.subr.bf16.mxu0 0
        %1745 = vmatpush1.bf16.msra.mxu0 0
        %1746 = vmatprep.subr.bf16.mxu0 0
        %1747 = vmatpush1.bf16.msra.mxu0 0
        %1748 = vmatprep.subr.bf16.mxu0 0
        %1749 = vmatpush1.bf16.msra.mxu0 0
        %1750 = vmatprep.subr.bf16.mxu0 0
        %1751 = vmatpush1.bf16.msra.mxu0 0
        %1752 = vmatprep.subr.bf16.mxu0 0
        %1753 = vmatpush1.bf16.msra.mxu0 0
        %1754 = vmatprep.subr.bf16.mxu0 0
        %1755 = vmatpush1.bf16.msra.mxu0 0
        %1756 = vmatprep.subr.bf16.mxu0 0
        %1757 = vmatpush1.bf16.msra.mxu0 0
        %1758 = vmatprep.subr.bf16.mxu0 0
        %1759 = vmatpush1.bf16.msra.mxu0 0
        %1760 = vmatprep.subr.bf16.mxu0 0
        %1761 = vmatpush1.bf16.msra.mxu0 0
        %1762 = vmatprep.subr.bf16.mxu0 0
        %1763 = vmatpush1.bf16.msra.mxu0 0
        %1764 = vmatprep.subr.bf16.mxu0 0
        %1765 = vmatpush1.bf16.msra.mxu0 0
        %1766 = vmatprep.subr.bf16.mxu0 0
        %1767 = vmatpush1.bf16.msra.mxu0 0
        %1768 = vmatprep.subr.bf16.mxu0 0
        %1769 = vmatpush1.bf16.msra.mxu0 0
        %1770 = vmatprep.mubr.bf16.mxu0 0
        %1771 = vmatmul.mubr.bf16.gmra.mrb[0].mxu0 %v1733
        %v1772 = vpop.f32.mrb[0].mxu0
        %v1773 = vadd.f32 0.0, %v1772
        %v1774 = vpop.f32.mrb[0].mxu0
        %v1775 = vpop.f32.mrb[0].mxu0
        %v1776 = vpop.f32.mrb[0].mxu0
        %1777 = vdwg.mxu0
        %v1778 = vrcp.pop %v1676
        %v1779 = vrcp.pop %v1679
        %v1780 = vmul.f32 %v1725, %v1778
        %v1781 = vmul.f32 %v1773, %v1779
        %1784 = vrot.lane.b32.xlu0 %v1780, 16
        %v1785 = vpop.permute.xlu0 %1784
        %1786 = vrot.lane.b32.xlu0 %v1781, 16
        %v1787 = vpop.permute.xlu0 %1786
        %v1790 = vsel %vm1347, %v1560, %v1785
        %v1791 = vsel %vm1347, %v1561, %v1787
        %v1792 = vpack.c.bf16 %v1791, %v1790
        %v1793 = vld [vmem:[%s958] sm:$0xf]
        %v1794 = vld [vmem:[%s958 + $0x4] sm:$0xf]
        %v1795 = vld [vmem:[%s958 + $0x8] sm:$0xf]
        %v1796 = vld [vmem:[%s958 + $0xc] sm:$0xf]
        %v1797 = vld [vmem:[%s966] sm:$0x1]
        %v1799 = vlaneseq
        %v1800 = vshrl.u32 %v1799, 7
        %v1801 = vsub.s32 0, %v1800
        %v1802 = vrot.slane %v1797, %v1801
        %v1808 = vunpack.c.l.b16 %v1793
        %v1809 = vunpack.c.l.b16 %v1794
        %v1810 = vunpack.c.l.b16 %v1795
        %v1811 = vunpack.c.l.b16 %v1796
        %v1812 = vpack.c.b16 %v1809, %v1808
        %v1813 = vpack.c.b16 %v1811, %v1810
        %v1817 = vsel %vm1153, %v1792, 0
        %1819 = vmatprep.subr.bf16.mxu0 0
        %1820 = vmatpush1.bf16.msra.mxu0 %v1812
        %1821 = vmatprep.subr.bf16.mxu0 0
        %1822 = vmatpush1.bf16.msra.mxu0 %v1813
        %1823 = vmatprep.subr.bf16.mxu0 0
        %1824 = vmatpush1.bf16.msra.mxu0 0
        %1825 = vmatprep.subr.bf16.mxu0 0
        %1826 = vmatpush1.bf16.msra.mxu0 0
        %1827 = vmatprep.subr.bf16.mxu0 0
        %1828 = vmatpush1.bf16.msra.mxu0 0
        %1829 = vmatprep.subr.bf16.mxu0 0
        %1830 = vmatpush1.bf16.msra.mxu0 0
        %1831 = vmatprep.subr.bf16.mxu0 0
        %1832 = vmatpush1.bf16.msra.mxu0 0
        %1833 = vmatprep.subr.bf16.mxu0 0
        %1834 = vmatpush1.bf16.msra.mxu0 0
        %1835 = vmatprep.subr.bf16.mxu0 0
        %1836 = vmatpush1.bf16.msra.mxu0 0
        %1837 = vmatprep.subr.bf16.mxu0 0
        %1838 = vmatpush1.bf16.msra.mxu0 0
        %1839 = vmatprep.subr.bf16.mxu0 0
        %1840 = vmatpush1.bf16.msra.mxu0 0
        %1841 = vmatprep.subr.bf16.mxu0 0
        %1842 = vmatpush1.bf16.msra.mxu0 0
        %1843 = vmatprep.subr.bf16.mxu0 0
        %1844 = vmatpush1.bf16.msra.mxu0 0
        %1845 = vmatprep.subr.bf16.mxu0 0
        %1846 = vmatpush1.bf16.msra.mxu0 0
        %1847 = vmatprep.subr.bf16.mxu0 0
        %1848 = vmatpush1.bf16.msra.mxu0 0
        %1849 = vmatprep.subr.bf16.mxu0 0
        %1850 = vmatpush1.bf16.msra.mxu0 0
        %1851 = vmatprep.mubr.bf16.mxu0 0
        %1852 = vmatmul.mubr.bf16.gmra.mrb[0].mxu0 %v1817
        %v1853 = vpop.f32.mrb[0].mxu0
        %v1854 = vadd.f32 %v1802, %v1853
        %v1855 = vpop.f32.mrb[0].mxu0
        %v1856 = vpop.f32.mrb[0].mxu0
        %v1857 = vadd.f32 %v1802, %v1856
        %v1858 = vpop.f32.mrb[0].mxu0
        %1859 = vdwg.mxu0
        %v1860 = vadd.f32 %v1195, %v1854
        %v1861 = vadd.f32 %v1196, %v1857
        %v1862 = vld [vmem:[%s974] sm:$0x1]
        %v1863 = vld [vmem:[%s982] sm:$0x1]
        %v1864 = vsel %vm1153, %v1860, 0.0
        %1865 = vadd.xlane.f32.xlu0 %v1864
        %v1866 = vpop.xlane.xlu0 %1865
        %v1867 = vsel %vm1153, %v1861, 0.0
        %1868 = vadd.xlane.f32.xlu0 %v1867
        %v1869 = vpop.xlane.xlu0 %1868
        %v1870 = vmul.f32 %v1866, %v1160
        %v1871 = vmul.f32 %v1869, %v1160
        %v1872 = vsub.f32 %v1860, %v1870
        %v1873 = vsub.f32 %v1861, %v1871
        %v1874 = vmul.f32 %v1872, %v1872
        %v1875 = vmul.f32 %v1873, %v1873
        %v1876 = vsel %vm1153, %v1874, 0.0
        %1877 = vadd.xlane.f32.xlu0 %v1876
        %v1878 = vpop.xlane.xlu0 %1877
        %v1879 = vsel %vm1153, %v1875, 0.0
        %1880 = vadd.xlane.f32.xlu0 %v1879
        %v1881 = vpop.xlane.xlu0 %1880
        %v1882 = vmul.f32 %v1878, %v1160
        %v1883 = vmul.f32 %v1881, %v1160
        %v1884 = vadd.f32 %v1882, 1e-07
        %v1885 = vadd.f32 %v1883, 1e-07
        %v1886 = vrsqrt.pop %v1884
        %v1887 = vrsqrt.pop %v1885
        %v1888 = vmul.f32 %v1872, %v1886
        %v1889 = vmul.f32 %v1873, %v1887
        %v1891 = vlaneseq
        %v1892 = vshrl.u32 %v1891, 7
        %v1893 = vsub.s32 0, %v1892
        %v1894 = vrot.slane %v1862, %v1893
        %v1896 = vmul.f32 %v1888, %v1894
        %v1897 = vmul.f32 %v1889, %v1894
        %v1899 = vlaneseq
        %v1900 = vshrl.u32 %v1899, 7
        %v1901 = vsub.s32 0, %v1900
        %v1902 = vrot.slane %v1863, %v1901
        %v1904 = vadd.f32 %v1896, %v1902
        %v1905 = vadd.f32 %v1897, %v1902
        %v1906 = vpack.c.bf16 %v1905, %v1904
        %v1907 = vld [vmem:[%s1124] sm:$0xf]
        %v1908 = vld [vmem:[%s1124 + $0x4] sm:$0xf]
        %v1909 = vld [vmem:[%s1124 + $0x8] sm:$0xf]
        %v1910 = vld [vmem:[%s1124 + $0xc] sm:$0xf]
        %v1911 = vld [vmem:[%s1127] sm:$0x1]
        %v1913 = vlaneseq
        %v1914 = vshrl.u32 %v1913, 7
        %v1915 = vsub.s32 0, %v1914
        %v1916 = vrot.slane %v1911, %v1915
        %v1922 = vunpack.c.l.b16 %v1907
        %v1923 = vunpack.c.l.b16 %v1908
        %v1924 = vunpack.c.l.b16 %v1909
        %v1925 = vunpack.c.l.b16 %v1910
        %v1926 = vpack.c.b16 %v1923, %v1922
        %v1927 = vpack.c.b16 %v1925, %v1924
        %v1931 = vsel %vm1153, %v1906, 0
        %1933 = vmatprep.subr.bf16.mxu0 0
        %1934 = vmatpush1.bf16.msra.mxu0 %v1926
        %1935 = vmatprep.subr.bf16.mxu0 0
        %1936 = vmatpush1.bf16.msra.mxu0 %v1927
        %1937 = vmatprep.subr.bf16.mxu0 0
        %1938 = vmatpush1.bf16.msra.mxu0 0
        %1939 = vmatprep.subr.bf16.mxu0 0
        %1940 = vmatpush1.bf16.msra.mxu0 0
        %1941 = vmatprep.subr.bf16.mxu0 0
        %1942 = vmatpush1.bf16.msra.mxu0 0
        %1943 = vmatprep.subr.bf16.mxu0 0
        %1944 = vmatpush1.bf16.msra.mxu0 0
        %1945 = vmatprep.subr.bf16.mxu0 0
        %1946 = vmatpush1.bf16.msra.mxu0 0
        %1947 = vmatprep.subr.bf16.mxu0 0
        %1948 = vmatpush1.bf16.msra.mxu0 0
        %1949 = vmatprep.subr.bf16.mxu0 0
        %1950 = vmatpush1.bf16.msra.mxu0 0
        %1951 = vmatprep.subr.bf16.mxu0 0
        %1952 = vmatpush1.bf16.msra.mxu0 0
        %1953 = vmatprep.subr.bf16.mxu0 0
        %1954 = vmatpush1.bf16.msra.mxu0 0
        %1955 = vmatprep.subr.bf16.mxu0 0
        %1956 = vmatpush1.bf16.msra.mxu0 0
        %1957 = vmatprep.subr.bf16.mxu0 0
        %1958 = vmatpush1.bf16.msra.mxu0 0
        %1959 = vmatprep.subr.bf16.mxu0 0
        %1960 = vmatpush1.bf16.msra.mxu0 0
        %1961 = vmatprep.subr.bf16.mxu0 0
        %1962 = vmatpush1.bf16.msra.mxu0 0
        %1963 = vmatprep.subr.bf16.mxu0 0
        %1964 = vmatpush1.bf16.msra.mxu0 0
        %1965 = vmatprep.mubr.bf16.mxu0 0
        %1966 = vmatmul.mubr.bf16.gmra.mrb[0].mxu0 %v1931
        %v1967 = vpop.f32.mrb[0].mxu0
        %v1968 = vadd.f32 %v1916, %v1967
        %v1969 = vpop.f32.mrb[0].mxu0
        %v1970 = vpop.f32.mrb[0].mxu0
        %v1971 = vadd.f32 %v1916, %v1970
        %v1972 = vpop.f32.mrb[0].mxu0
        %1973 = vdwg.mxu0
        %v1974 = vmax.f32 %v1968, 0.0
        %v1975 = vmax.f32 %v1971, 0.0
        %v1976 = vpack.c.bf16 %v1975, %v1974
        %v1977 = vld [vmem:[%s991] sm:$0xf]
        %v1978 = vld [vmem:[%s991 + $0x4] sm:$0xf]
        %v1979 = vld [vmem:[%s991 + $0x8] sm:$0xf]
        %v1980 = vld [vmem:[%s991 + $0xc] sm:$0xf]
        %v1981 = vld [vmem:[%s1130] sm:$0x1]
        %v1983 = vlaneseq
        %v1984 = vshrl.u32 %v1983, 7
        %v1985 = vsub.s32 0, %v1984
        %v1986 = vrot.slane %v1981, %v1985
        %v1992 = vunpack.c.l.b16 %v1977
        %v1993 = vunpack.c.l.b16 %v1978
        %v1994 = vunpack.c.l.b16 %v1979
        %v1995 = vunpack.c.l.b16 %v1980
        %v1996 = vpack.c.b16 %v1993, %v1992
        %v1997 = vpack.c.b16 %v1995, %v1994
        %v2001 = vsel %vm1153, %v1976, 0
        %2003 = vmatprep.subr.bf16.mxu0 0
        %2004 = vmatpush1.bf16.msra.mxu0 %v1996
        %2005 = vmatprep.subr.bf16.mxu0 0
        %2006 = vmatpush1.bf16.msra.mxu0 %v1997
        %2007 = vmatprep.subr.bf16.mxu0 0
        %2008 = vmatpush1.bf16.msra.mxu0 0
        %2009 = vmatprep.subr.bf16.mxu0 0
        %2010 = vmatpush1.bf16.msra.mxu0 0
        %2011 = vmatprep.subr.bf16.mxu0 0
        %2012 = vmatpush1.bf16.msra.mxu0 0
        %2013 = vmatprep.subr.bf16.mxu0 0
        %2014 = vmatpush1.bf16.msra.mxu0 0
        %2015 = vmatprep.subr.bf16.mxu0 0
        %2016 = vmatpush1.bf16.msra.mxu0 0
        %2017 = vmatprep.subr.bf16.mxu0 0
        %2018 = vmatpush1.bf16.msra.mxu0 0
        %2019 = vmatprep.subr.bf16.mxu0 0
        %2020 = vmatpush1.bf16.msra.mxu0 0
        %2021 = vmatprep.subr.bf16.mxu0 0
        %2022 = vmatpush1.bf16.msra.mxu0 0
        %2023 = vmatprep.subr.bf16.mxu0 0
        %2024 = vmatpush1.bf16.msra.mxu0 0
        %2025 = vmatprep.subr.bf16.mxu0 0
        %2026 = vmatpush1.bf16.msra.mxu0 0
        %2027 = vmatprep.subr.bf16.mxu0 0
        %2028 = vmatpush1.bf16.msra.mxu0 0
        %2029 = vmatprep.subr.bf16.mxu0 0
        %2030 = vmatpush1.bf16.msra.mxu0 0
        %2031 = vmatprep.subr.bf16.mxu0 0
        %2032 = vmatpush1.bf16.msra.mxu0 0
        %2033 = vmatprep.subr.bf16.mxu0 0
        %2034 = vmatpush1.bf16.msra.mxu0 0
        %2035 = vmatprep.mubr.bf16.mxu0 0
        %2036 = vmatmul.mubr.bf16.gmra.mrb[0].mxu0 %v2001
        %v2037 = vpop.f32.mrb[0].mxu0
        %v2038 = vadd.f32 %v1986, %v2037
        %v2039 = vpop.f32.mrb[0].mxu0
        %v2040 = vpop.f32.mrb[0].mxu0
        %v2041 = vadd.f32 %v1986, %v2040
        %v2042 = vpop.f32.mrb[0].mxu0
        %2043 = vdwg.mxu0
        %v2044 = vadd.f32 %v2038, %v1904
        %v2045 = vadd.f32 %v2041, %v1905
        %2047 = vset.pattern.permute.xlu0 0
        %2048 = vperm.xlu0 %2047, %v1143
        %v2049 = vpop.permute.xlu0 %2048
        %2052 = vset.pattern.permute.xlu0 0
        %2053 = vperm.xlu0 %2052, %v1144
        %v2054 = vpop.permute.xlu0 %2053
        %v2056 = vmul.f32 %v2044, %v2049
        %v2057 = vmul.f32 %v2045, %v2054
        %2058 = vst.msk [vmem:[#allocation2] sm:$0xff] %vm1153, %v2056
        %2059 = vst.msk [vmem:[#allocation2 + $0x8] sm:$0xff] %vm1153, %v2057
        %p2060 = scmp.eq.s32.totalorder %s57, 1
        // Predicated region
        $region153: #{tpu_custom_call.1} parent=99 // pred_check
          %p2061 = pneg %p2060
        $region154: #{tpu_custom_call.1} parent=99 // pred_check_branch
          %2063 = sbr.rel (%p2061) target = $region156
        $region155: #{tpu_custom_call.1} parent=99 // pred_region
          %v2064 = vld [vmem:[%s18] sm:$0x1]
          %v2065 = vld [vmem:[%s19] sm:$0x1]
          %v2066 = vsel %vm1153, %v2056, 0.0
          %2067 = vadd.xlane.f32.xlu0 %v2066
          %v2068 = vpop.xlane.xlu0 %2067
          %v2069 = vsel %vm1153, %v2057, 0.0
          %2070 = vadd.xlane.f32.xlu0 %v2069
          %v2071 = vpop.xlane.xlu0 %2070
          %v2072 = vmul.f32 %v2068, %v1160
          %v2073 = vmul.f32 %v2071, %v1160
          %v2074 = vsub.f32 %v2056, %v2072
          %v2075 = vsub.f32 %v2057, %v2073
          %v2076 = vmul.f32 %v2074, %v2074
          %v2077 = vmul.f32 %v2075, %v2075
          %v2078 = vsel %vm1153, %v2076, 0.0
          %2079 = vadd.xlane.f32.xlu0 %v2078
          %v2080 = vpop.xlane.xlu0 %2079
          %v2081 = vsel %vm1153, %v2077, 0.0
          %2082 = vadd.xlane.f32.xlu0 %v2081
          %v2083 = vpop.xlane.xlu0 %2082
          %v2084 = vmul.f32 %v2080, %v1160
          %v2085 = vmul.f32 %v2083, %v1160
          %v2086 = vadd.f32 %v2084, 1e-08
          %v2087 = vadd.f32 %v2085, 1e-08
          %v2088 = vrsqrt.pop %v2086
          %v2089 = vrsqrt.pop %v2087
          %v2090 = vmul.f32 %v2074, %v2088
          %v2091 = vmul.f32 %v2075, %v2089
          %v2093 = vlaneseq
          %v2094 = vshrl.u32 %v2093, 7
          %v2095 = vsub.s32 0, %v2094
          %v2096 = vrot.slane %v2064, %v2095
          %v2098 = vmul.f32 %v2090, %v2096
          %v2099 = vmul.f32 %v2091, %v2096
          %v2101 = vlaneseq
          %v2102 = vshrl.u32 %v2101, 7
          %v2103 = vsub.s32 0, %v2102
          %v2104 = vrot.slane %v2065, %v2103
          %v2106 = vadd.f32 %v2098, %v2104
          %v2107 = vadd.f32 %v2099, %v2104
          %v2108 = vld [vmem:[#allocation6] sm:$0xf]
          %v2109 = vld [vmem:[#allocation6 + $0x4] sm:$0xf]
          %v2110 = vunpack.c.l.bf16 %v2108
          %v2111 = vunpack.c.l.bf16 %v2109
          %v2112 = vmul.f32 %v2106, %v2110
          %v2113 = vmul.f32 %v2107, %v2111
          %v2114 = vsel %vm1153, %v2112, 0.0
          %2115 = vadd.xlane.f32.xlu0 %v2114
          %v2116 = vpop.xlane.xlu0 %2115
          %v2117 = vsel %vm1153, %v2113, 0.0
          %2118 = vadd.xlane.f32.xlu0 %v2117
          %v2119 = vpop.xlane.xlu0 %2118
          %v2122 = vlaneseq
          %v2123 = vshrl.u32 %v2122, 7
          %v2124 = vsub.s32 %v1148, %v2123
          %v2125 = vrot.slane %v2116, %v2124
          %v2126 = vlaneseq
          %v2127 = vshrl.u32 %v2126, 7
          %v2128 = vsub.s32 %v1148, %v2127
          %v2129 = vrot.slane %v2119, %v2128
          %vm2130 = vcmask 1041409
          %v2131 = vsel %vm2130, %v2129, %v2125
          %vm2133 = vcmask 58368
          %2134 = vst.msk [vmem:[#allocation23] sm:$0x3] %vm2133, %v2131
          %v2135 = vld [vmem:[#allocation8] sm:$0xf]
          %v2136 = vld [vmem:[#allocation8 + $0x4] sm:$0xf]
          %v2137 = vunpack.c.l.bf16 %v2135
          %v2138 = vunpack.c.l.bf16 %v2136
          %v2139 = vmul.f32 %v2106, %v2137
          %v2140 = vmul.f32 %v2107, %v2138
          %v2141 = vsel %vm1153, %v2139, 0.0
          %2142 = vadd.xlane.f32.xlu0 %v2141
          %v2143 = vpop.xlane.xlu0 %2142
          %v2144 = vsel %vm1153, %v2140, 0.0
          %2145 = vadd.xlane.f32.xlu0 %v2144
          %v2146 = vpop.xlane.xlu0 %2145
          %v2149 = vlaneseq
          %v2150 = vshrl.u32 %v2149, 7
          %v2151 = vsub.s32 %v1148, %v2150
          %v2152 = vrot.slane %v2143, %v2151
          %v2153 = vlaneseq
          %v2154 = vshrl.u32 %v2153, 7
          %v2155 = vsub.s32 %v1148, %v2154
          %v2156 = vrot.slane %v2146, %v2155
          %v2157 = vsel %vm2130, %v2156, %v2152
          %2159 = vst.msk [vmem:[#allocation24] sm:$0x3] %vm2133, %v2157
        $region156: #{tpu_custom_call.1} parent=99 // pred_fallthru
          _
        // Predicated region
        $region157: #{tpu_custom_call.1} parent=99 // pred_check
          %p2160 = pneg %p592
        $region158: #{tpu_custom_call.1} parent=99 // pred_check_branch
          %2162 = sbr.rel (%p2160) target = $region160
        $region159: #{tpu_custom_call.1} parent=99 // pred_region
          %s2164 = ssub.s32 32, 32
          %2165 = vsyncadd [#allocation5], %s2164
          %s2166 = smul.addr %s56, 32
          %s2167 = scalar_lea.hbm %s20, %s2166
          %s2169 = sshll.u32 [#allocation23], 4
          %s2170 = int_to_ptr.vmem [resolvable:$true] %s2169
          %2172 = dma.vmem_to_hbm [thread:$0]  %s2170, 32, %s2167, [#allocation5]
        $region160: #{tpu_custom_call.1} parent=99 // pred_fallthru
          _
        // Predicated region
        $region161: #{tpu_custom_call.1} parent=99 // pred_check
          %p2173 = pneg %p618
        $region162: #{tpu_custom_call.1} parent=99 // pred_check_branch
          %2175 = sbr.rel (%p2173) target = $region164
        $region163: #{tpu_custom_call.1} parent=99 // pred_region
          %s2177 = ssub.s32 32, 32
          %2178 = vsyncadd [#allocation25], %s2177
          %s2179 = smul.addr %s56, 32
          %s2180 = scalar_lea.hbm %s21, %s2179
          %s2182 = sshll.u32 [#allocation24], 4
          %s2183 = int_to_ptr.vmem [resolvable:$true] %s2182
          %2185 = dma.vmem_to_hbm [thread:$0]  %s2183, 32, %s2180, [#allocation25]
        $region164: #{tpu_custom_call.1} parent=99 // pred_fallthru
          _
        // Predicated region
        $region165: #{tpu_custom_call.1} parent=99 // pred_check
          %p2186 = pneg %p592
        $region166: #{tpu_custom_call.1} parent=99 // pred_check_branch
          %2188 = sbr.rel (%p2186) target = $region168
        $region167: #{tpu_custom_call.1} parent=99 // pred_region
          %2189 = dma.done [#allocation5], 32
        $region168: #{tpu_custom_call.1} parent=99 // pred_fallthru
          _
        // Predicated region
        $region169: #{tpu_custom_call.1} parent=99 // pred_check
          %p2190 = pneg %p618
        $region170: #{tpu_custom_call.1} parent=99 // pred_check_branch
          %2192 = sbr.rel (%p2190) target = $region172
        $region171: #{tpu_custom_call.1} parent=99 // pred_region
          %2193 = dma.done [#allocation25], 32
        $region172: #{tpu_custom_call.1} parent=99 // pred_fallthru
          _
      $region100: #{tpu_custom_call.1} parent=5 // pred_fallthru
        _
      %p2194 = scmp.le.s32.totalorder 2, %s47
      // Predicated region
      $region173: #{tpu_custom_call.1} parent=5 // pred_check
        %p2195 = pneg %p2194
      $region174: #{tpu_custom_call.1} parent=5 // pred_check_branch
        %2197 = sbr.rel (%p2195) target = $region176
      $region175: #{tpu_custom_call.1} parent=5 // pred_region
        %s2198 = ssub.s32 %s47, 2
      $region176: #{tpu_custom_call.1} parent=5 // pred_fallthru
        _
    $region6: #{tpu_custom_call.1} parent=1 // loop_footer
      %s51 = sadd.s32 1, %s47
    $region7: #{tpu_custom_call.1} parent=1 // loop_footer_branch
      %46 = sbr.rel target = $region3
    $region8: #{tpu_custom_call.1} parent=1 // loop_exit
      _
    %2199 = vsyncpa [#allocation4], 1
    %s2200 = scalar_lea.sflag [#allocation4], 1
    %2201 = vsyncpa %s2200, 1
    %2202 = vsyncpa [#allocation7], 1
    %2203 = vsyncpa [#allocation10], 1
    %s2204 = scalar_lea.sflag [#allocation10], 1
    %2205 = vsyncpa %s2204, 1
    %2206 = vsyncpa [#allocation13], 1
    %s2207 = scalar_lea.sflag [#allocation13], 1
    %2208 = vsyncpa %s2207, 1
    %2209 = vsyncpa [#allocation16], 1
    %s2210 = scalar_lea.sflag [#allocation16], 1
    %2211 = vsyncpa %s2210, 1
    %2212 = vsyncpa [#allocation19], 1
    %s2213 = scalar_lea.sflag [#allocation19], 1
    %2214 = vsyncpa %s2213, 1
    %2215 = vsyncpa [#allocation22], 1
    %s2216 = scalar_lea.sflag [#allocation22], 1
    %2217 = vsyncpa %s2216, 1
    %2218 = vsyncpa [#allocation5], 1
    %s2219 = scalar_lea.sflag [#allocation5], 1
    %2220 = vsyncpa %s2219, 1
    %2221 = vsyncpa [#allocation25], 1

</llo_original>
